<compile_context>
chip_gen: v7x
topology: tpu7x:2x2x1
jax: 0.10.0
libtpu: 0.0.40
codegen_flags: <defaults>
</compile_context>

<pallas_src>
import functools
import math

import jax
import jax.numpy as jnp
from jax import lax
from jax.experimental import pallas as pl
from jax.experimental.pallas import tpu as pltpu

D_MODEL = 32
D_IN = 16
N_HEADS = 8                     # fixed by the torch module
HEAD_DIM = D_MODEL // N_HEADS
LN_EPS = 1e-5                   # torch.nn.LayerNorm default

DEFAULT_BLOCK_B = 256           # batch elements per grid step; comfortably inside
                                # the 32 MiB scoped-VMEM limit on v5e/v6e/v7x.


def _round8(n):
    return ((n + 7) // 8) * 8


def _slab_layout(d_in, d_model):
    """Row offsets of every 32-lane parameter inside the packed slab."""
    offs, off = {}, 0
    for name, rows in (("w1", d_in), ("w2", d_model), ("wq", d_model),
                       ("wo", d_model), ("w3", d_model), ("vec", 16)):
        offs[name] = off
        off += _round8(rows)
    return offs, off


# row indices inside the "vec" block of the slab
(_V_B1, _V_G1, _V_BE1, _V_B2, _V_BQ, _V_BO,
 _V_B3, _V_G2, _V_BE2, _V_W4, _V_B4) = range(11)


def _erf(x):
    # Abramowitz & Stegun 7.1.26 (|err| < 1.5e-7), built only from ops with
    # guaranteed Mosaic lowerings.  The divide is kept exact (not the approx
    # reciprocal suggested in review) so GELU stays far inside the 1e-3 tolerance.
    a1, a2, a3, a4, a5 = (0.254829592, -0.284496736, 1.421413741,
                          -1.453152027, 1.061405429)
    p = 0.3275911
    sgn = jnp.where(x >= 0.0, 1.0, -1.0)
    ax = jnp.abs(x)
    t = 1.0 / (1.0 + p * ax)
    poly = ((((a5 * t + a4) * t + a3) * t + a2) * t + a1) * t
    return sgn * (1.0 - poly * jnp.exp(-ax * ax))


def _gelu(x):
    # exact (erf-based) GELU, matching torch.nn.GELU() default
    return 0.5 * x * (1.0 + _erf(x * (1.0 / math.sqrt(2.0))))


def _layernorm(x, gamma, beta):
    mu = jnp.mean(x, axis=-1, keepdims=True)
    var = jnp.mean((x - mu) ** 2, axis=-1, keepdims=True)
    return (x - mu) * lax.rsqrt(var + LN_EPS) * gamma + beta


def _decoder_kernel(cell_ref, gene_ref, slab_ref, wkvb_ref, g_ref, gt_ref, out_ref):
    tb, s_kv, d_in = cell_ref.shape
    _, s_q, d_model = gene_ref.shape
    nk = tb * s_kv
    nq = tb * s_q
    offs, _ = _slab_layout(d_in, d_model)

    # ---- unpack the parameter slabs (static slices) -------------------------
    w1 = slab_ref[offs["w1"]:offs["w1"] + d_in, :]
    w2 = slab_ref[offs["w2"]:offs["w2"] + d_model, :]
    wq = slab_ref[offs["wq"]:offs["wq"] + d_model, :]
    wo = slab_ref[offs["wo"]:offs["wo"] + d_model, :]
    w3 = slab_ref[offs["w3"]:offs["w3"] + d_model, :]
    vec = slab_ref[offs["vec"]:offs["vec"] + 11, :]
    b1, g1, be1 = vec[_V_B1:_V_B1 + 1], vec[_V_G1:_V_G1 + 1], vec[_V_BE1:_V_BE1 + 1]
    b2, bq, bo = vec[_V_B2:_V_B2 + 1], vec[_V_BQ:_V_BQ + 1], vec[_V_BO:_V_BO + 1]
    b3, g2, be2 = vec[_V_B3:_V_B3 + 1], vec[_V_G2:_V_G2 + 1], vec[_V_BE2:_V_BE2 + 1]
    w4row = vec[_V_W4:_V_W4 + 1]            # (1, d_model)  == w4.T
    b4 = vec[_V_B4:_V_B4 + 1, 0:1]          # (1, 1)

    wkv = wkvb_ref[0:d_model, :]            # (d_model, 2*d_model) fused K|V proj
    bkv = wkvb_ref[d_model:d_model + 1, :]  # (1, 2*d_model)
    gmat = g_ref[...]                       # (d_model, H) head grouping, scale folded in
    gtmat = gt_ref[...]                     # (H, d_model) head expansion

    # flatten (TB, S, d) -> (TB*S, d); S == 8 keeps this layout-free for f32
    cell = cell_ref[...].reshape(nk, d_in)
    gene = gene_ref[...].reshape(nq, d_model)

    # ---- MLPBeforeCrossAttn on cell_emb: Linear -> LayerNorm -> GELU -> Linear
    h = jnp.dot(cell, w1, preferred_element_type=jnp.float32) + b1
    h = _gelu(_layernorm(h, g1, be1))
    kvsrc = jnp.dot(h, w2, preferred_element_type=jnp.float32) + b2        # (nk, dm)

    # ---- Q and fused K|V projections ----------------------------------------
    q = jnp.dot(gene, wq, preferred_element_type=jnp.float32) + bq         # (nq, dm)
    kvp = jnp.dot(kvsrc, wkv, preferred_element_type=jnp.float32) + bkv    # (nk, 2dm)
    k = kvp[:, 0:d_model]
    v = kvp[:, d_model:2 * d_model]

    q3 = q.reshape(tb, s_q, d_model)
    k3 = k.reshape(tb, s_kv, d_model)
    v3 = v.reshape(tb, s_kv, d_model)

    # ---- multi-head cross attention ------------------------------------------
    # Heads never leave the lane axis.  For every kv position j:
    #   s_j[n, h] = sum_{d in head h} q[n, d] * k[b(n), j, d]   ==  (q * k_j) @ G
    # so there are no per-head slices/concat and every matmul streams M = TB*S_q
    # rows through the MXU.  Softmax over the S_kv positions is elementwise work
    # on (nq, H) arrays; the context is rebuilt with G^T (prob broadcast per head).
    s_list = []
    for j in range(s_kv):
        qk = (q3 * k3[:, j:j + 1, :]).reshape(nq, d_model)
        s_list.append(jnp.dot(qk, gmat, preferred_element_type=jnp.float32))  # (nq, H)

    m = functools.reduce(jnp.maximum, s_list)
    p_list = [jnp.exp(s - m) for s in s_list]
    denom = functools.reduce(lambda a, b: a + b, p_list)
    inv = pl.reciprocal(denom, approx=True)          # EUP slot, off the VALU

    def _ctx_term(j):
        wj = jnp.dot(p_list[j] * inv, gtmat,
                     preferred_element_type=jnp.float32).reshape(tb, s_q, d_model)
        return wj * v3[:, j:j + 1, :]

    ctx3 = _ctx_term(0)
    for j in range(1, s_kv):
        ctx3 = ctx3 + _ctx_term(j)
    ctx = ctx3.reshape(nq, d_model)                  # head-contiguous, ready for W_o

    attn = jnp.dot(ctx, wo, preferred_element_type=jnp.float32) + bo

    # ---- MLPAfterCrossAttn: Linear -> LayerNorm -> GELU -> Linear(d_model, 1) ----
    m2 = jnp.dot(attn, w3, preferred_element_type=jnp.float32) + b3
    m2 = _gelu(_layernorm(m2, g2, be2))
    # final (d_model -> 1) projection as VPU multiply + lane reduce; result is a
    # lane-dense (TB, S_q) block (no trailing size-1 store).
    pred = jnp.sum(m2.reshape(tb, s_q, d_model) * w4row, axis=-1) + b4
    out_ref[...] = pred.astype(out_ref.dtype)


def _pad_rows(a, rows):
    pad = rows - a.shape[0]
    if pad == 0:
        return a
    return jnp.concatenate([a, jnp.zeros((pad, a.shape[1]), a.dtype)], axis=0)


def _pack_params(p):
    """Pack the 20 parameter arrays into: 32-lane slab, 64-lane K|V slab, G, G^T."""
    d_in, d_model = p["w1"].shape
    head_dim = d_model // N_HEADS
    offs, total = _slab_layout(d_in, d_model)

    vec_rows = jnp.concatenate(
        [p["b1"], p["g1"], p["be1"], p["b2"], p["bq"], p["bo"],
         p["b3"], p["g2"], p["be2"],
         p["w4"].reshape(1, d_model),                          # == w4.T
         jnp.broadcast_to(p["b4"].reshape(1, 1), (1, d_model))], axis=0)

    slab = jnp.concatenate(
        [_pad_rows(p["w1"].astype(jnp.float32), _round8(d_in)),
         _pad_rows(p["w2"].astype(jnp.float32), _round8(d_model)),
         _pad_rows(p["wq"].astype(jnp.float32), _round8(d_model)),
         _pad_rows(p["wo"].astype(jnp.float32), _round8(d_model)),
         _pad_rows(p["w3"].astype(jnp.float32), _round8(d_model)),
         _pad_rows(vec_rows.astype(jnp.float32), 16)], axis=0)
    assert slab.shape == (total, d_model)

    wkv = jnp.concatenate([p["wk"], p["wv"]], axis=1)          # (dm, 2dm)
    bkv = jnp.concatenate([p["bk"], p["bv"]], axis=1)          # (1, 2dm)
    wkvb = _pad_rows(jnp.concatenate([wkv, bkv], axis=0).astype(jnp.float32),
                     _round8(d_model + 1))

    head = jnp.arange(d_model, dtype=jnp.int32) // head_dim
    onehot = (head[:, None] == jnp.arange(N_HEADS, dtype=jnp.int32)[None, :])
    gmat = onehot.astype(jnp.float32) * (1.0 / math.sqrt(head_dim))   # (dm, H)
    gtmat = onehot.astype(jnp.float32).T                              # (H, dm)
    return slab, wkvb, gmat, gtmat


def cross_attn_decoder(cell_emb, gene_embs, params, *, block_b=DEFAULT_BLOCK_B):
    B, S_kv, d_in = cell_emb.shape
    Bq, S_q, d_model = gene_embs.shape
    assert B == Bq

    slab, wkvb, gmat, gtmat = _pack_params(params)

    # batch-blocking: TB batch elements per grid step
    if B <= block_b:
        tb, Bp = B, B
    else:
        tb = block_b if block_b % 8 == 0 else _round8(block_b)
        Bp = ((B + tb - 1) // tb) * tb
    if Bp != B:
        pad = ((0, Bp - B), (0, 0), (0, 0))
        cell_emb = jnp.pad(cell_emb, pad)
        gene_embs = jnp.pad(gene_embs, pad)

    in_specs = [
        pl.BlockSpec((tb, S_kv, d_in), lambda b: (b, 0, 0)),
        pl.BlockSpec((tb, S_q, d_model), lambda b: (b, 0, 0)),
        pl.BlockSpec(slab.shape, lambda b: (0, 0)),
        pl.BlockSpec(wkvb.shape, lambda b: (0, 0)),
        pl.BlockSpec(gmat.shape, lambda b: (0, 0)),
        pl.BlockSpec(gtmat.shape, lambda b: (0, 0)),
    ]
    out = pl.pallas_call(
        _decoder_kernel,
        out_shape=jax.ShapeDtypeStruct((Bp, S_q), jnp.float32),
        grid_spec=pltpu.PrefetchScalarGridSpec(
            num_scalar_prefetch=0,
            grid=(Bp // tb,),
            in_specs=in_specs,
            out_specs=pl.BlockSpec((tb, S_q), lambda b: (b, 0)),
        ),
        compiler_params=pltpu.CompilerParams(
            dimension_semantics=("parallel",),
            vmem_limit_bytes=32 * 1024 * 1024),
    )(cell_emb, gene_embs, slab, wkvb, gmat, gtmat)
    return out[:B]   # drop batch padding; matches torch's .squeeze(2) shape (B, S_q)


def init_params(key, d_model=D_MODEL, d_in=D_IN):
    ks = jax.random.split(key, 24)
    w = lambda k, shape, s=0.1: s * jax.random.normal(k, shape, jnp.float32)
    return dict(
        # MLPBeforeCrossAttn
        w1=w(ks[0], (d_in, d_model)),        b1=w(ks[1], (1, d_model)),
        g1=1.0 + w(ks[2], (1, d_model)),     be1=w(ks[3], (1, d_model)),
        w2=w(ks[4], (d_model, d_model)),     b2=w(ks[5], (1, d_model)),
        # MultiheadAttention (in_proj split into q/k/v + out_proj)
        wq=w(ks[6], (d_model, d_model)),     bq=w(ks[7], (1, d_model)),
        wk=w(ks[8], (d_model, d_model)),     bk=w(ks[9], (1, d_model)),
        wv=w(ks[10], (d_model, d_model)),    bv=w(ks[11], (1, d_model)),
        wo=w(ks[12], (d_model, d_model)),    bo=w(ks[13], (1, d_model)),
        # MLPAfterCrossAttn
        w3=w(ks[14], (d_model, d_model)),    b3=w(ks[15], (1, d_model)),
        g2=1.0 + w(ks[16], (1, d_model)),    be2=w(ks[17], (1, d_model)),
        w4=w(ks[18], (d_model, 1)),          b4=w(ks[19], (1, 1)),
    )


def reference(cell_emb, gene_embs, p):
    """Pure-JAX reference mirroring the PyTorch forward."""
    def ln(x, g, b):
        mu = x.mean(-1, keepdims=True)
        var = ((x - mu) ** 2).mean(-1, keepdims=True)
        return (x - mu) / jnp.sqrt(var + LN_EPS) * g + b
    gelu = lambda x: jax.nn.gelu(x, approximate=False)

    h = cell_emb @ p["w1"] + p["b1"]
    h = gelu(ln(h, p["g1"], p["be1"]))
    kv = h @ p["w2"] + p["b2"]

    q = gene_embs @ p["wq"] + p["bq"]
    k = kv @ p["wk"] + p["bk"]
    v = kv @ p["wv"] + p["bv"]
    B, Sq, _ = q.shape
    Skv = k.shape[1]
    qh = q.reshape(B, Sq, N_HEADS, HEAD_DIM)
    kh = k.reshape(B, Skv, N_HEADS, HEAD_DIM)
    vh = v.reshape(B, Skv, N_HEADS, HEAD_DIM)
    s = jnp.einsum("bqhd,bkhd->bhqk", qh, kh) / math.sqrt(HEAD_DIM)
    a = jax.nn.softmax(s, axis=-1)
    ctx = jnp.einsum("bhqk,bkhd->bqhd", a, vh).reshape(B, Sq, D_MODEL)
    attn_out = ctx @ p["wo"] + p["bo"]

    m = attn_out @ p["w3"] + p["b3"]
    m = gelu(ln(m, p["g2"], p["be2"]))
    pred = m @ p["w4"] + p["b4"]
    return pred[..., 0]


if __name__ == "__main__":
    key = jax.random.PRNGKey(0)
    k_cell, k_gene, k_param = jax.random.split(key, 3)

    B, S_kv, S_q = 2, 8, 8
    cell_emb = jax.random.normal(k_cell, (B, S_kv, D_IN), jnp.float32)
    gene_embs = jax.random.normal(k_gene, (B, S_q, D_MODEL), jnp.float32)
    params = init_params(k_param)

    out = jax.block_until_ready(jax.jit(cross_attn_decoder)(cell_emb, gene_embs, params))
    ref = reference(cell_emb, gene_embs, params)
    assert out.shape == (B, S_q), out.shape
    max_err = float(jnp.max(jnp.abs(out - ref)))
    if max_err > 1e-3:
        raise AssertionError(f"kernel mismatch vs reference: max abs err {max_err}")

    # also exercise the multi-block / padded-batch path (grid > 1, B % TB != 0)
    B2 = 40
    cell2 = jax.random.normal(jax.random.PRNGKey(1), (B2, S_kv, D_IN), jnp.float32)
    gene2 = jax.random.normal(jax.random.PRNGKey(2), (B2, S_q, D_MODEL), jnp.float32)
    out2 = jax.block_until_ready(
        cross_attn_decoder(cell2, gene2, params, block_b=16))
    ref2 = reference(cell2, gene2, params)
    max_err2 = float(jnp.max(jnp.abs(out2 - ref2)))
    if max_err2 > 1e-3:
        raise AssertionError(f"blocked kernel mismatch vs reference: max abs err {max_err2}")

    print("KERNEL_OK")
</pallas_src>

<mosaic_0001>
module attributes {stable_mosaic.version = 11 : i64} {
  func.func @_decoder_kernel(%arg0: i32, %arg1: memref<2x8x16xf32, #tpu.memory_space<vmem>>, %arg2: memref<2x8x32xf32, #tpu.memory_space<vmem>>, %arg3: memref<160x32xf32, #tpu.memory_space<vmem>>, %arg4: memref<40x64xf32, #tpu.memory_space<vmem>>, %arg5: memref<32x8xf32, #tpu.memory_space<vmem>>, %arg6: memref<8x32xf32, #tpu.memory_space<vmem>>, %arg7: memref<2x8xf32, #tpu.memory_space<vmem>>) attributes {dimension_semantics = [#tpu.dimension_semantics<parallel>], iteration_bounds = array<i64: 1>, scalar_prefetch = 0 : i64, scratch_operands = 0 : i64, tpu.core_type = #tpu.core_type<tc>, window_params = [{transform_indices = @transform_0, window_bounds = array<i64: 2, 8, 16>}, {transform_indices = @transform_1, window_bounds = array<i64: 2, 8, 32>}, {pipeline_mode = #tpu.pipeline_mode<synchronous>, transform_indices = @transform_2, window_bounds = array<i64: 160, 32>}, {pipeline_mode = #tpu.pipeline_mode<synchronous>, transform_indices = @transform_3, window_bounds = array<i64: 40, 64>}, {pipeline_mode = #tpu.pipeline_mode<synchronous>, transform_indices = @transform_4, window_bounds = array<i64: 32, 8>}, {pipeline_mode = #tpu.pipeline_mode<synchronous>, transform_indices = @transform_5, window_bounds = array<i64: 8, 32>}, {transform_indices = @transform_6, window_bounds = array<i64: 2, 8>}]} {
    %c0 = arith.constant 0 : index
    %c0_0 = arith.constant 0 : index
    %0 = vector.load %arg3[%c0, %c0_0] : memref<160x32xf32, #tpu.memory_space<vmem>>, vector<16x32xf32>
    %c16 = arith.constant 16 : index
    %c0_1 = arith.constant 0 : index
    %1 = vector.load %arg3[%c16, %c0_1] : memref<160x32xf32, #tpu.memory_space<vmem>>, vector<32x32xf32>
    %c48 = arith.constant 48 : index
    %c0_2 = arith.constant 0 : index
    %2 = vector.load %arg3[%c48, %c0_2] : memref<160x32xf32, #tpu.memory_space<vmem>>, vector<32x32xf32>
    %c80 = arith.constant 80 : index
    %c0_3 = arith.constant 0 : index
    %3 = vector.load %arg3[%c80, %c0_3] : memref<160x32xf32, #tpu.memory_space<vmem>>, vector<32x32xf32>
    %c112 = arith.constant 112 : index
    %c0_4 = arith.constant 0 : index
    %4 = vector.load %arg3[%c112, %c0_4] : memref<160x32xf32, #tpu.memory_space<vmem>>, vector<32x32xf32>
    %c144 = arith.constant 144 : index
    %c0_5 = arith.constant 0 : index
    %5 = vector.load %arg3[%c144, %c0_5] : memref<160x32xf32, #tpu.memory_space<vmem>>, vector<11x32xf32>
    %6 = vector.extract_strided_slice %5 {offsets = [0, 0], sizes = [1, 32], strides = [1, 1]} : vector<11x32xf32> to vector<1x32xf32>
    %7 = vector.extract_strided_slice %5 {offsets = [1, 0], sizes = [1, 32], strides = [1, 1]} : vector<11x32xf32> to vector<1x32xf32>
    %8 = vector.extract_strided_slice %5 {offsets = [2, 0], sizes = [1, 32], strides = [1, 1]} : vector<11x32xf32> to vector<1x32xf32>
    %9 = vector.extract_strided_slice %5 {offsets = [3, 0], sizes = [1, 32], strides = [1, 1]} : vector<11x32xf32> to vector<1x32xf32>
    %10 = vector.extract_strided_slice %5 {offsets = [4, 0], sizes = [1, 32], strides = [1, 1]} : vector<11x32xf32> to vector<1x32xf32>
    %11 = vector.extract_strided_slice %5 {offsets = [5, 0], sizes = [1, 32], strides = [1, 1]} : vector<11x32xf32> to vector<1x32xf32>
    %12 = vector.extract_strided_slice %5 {offsets = [6, 0], sizes = [1, 32], strides = [1, 1]} : vector<11x32xf32> to vector<1x32xf32>
    %13 = vector.extract_strided_slice %5 {offsets = [7, 0], sizes = [1, 32], strides = [1, 1]} : vector<11x32xf32> to vector<1x32xf32>
    %14 = vector.extract_strided_slice %5 {offsets = [8, 0], sizes = [1, 32], strides = [1, 1]} : vector<11x32xf32> to vector<1x32xf32>
    %15 = vector.extract_strided_slice %5 {offsets = [9, 0], sizes = [1, 32], strides = [1, 1]} : vector<11x32xf32> to vector<1x32xf32>
    %16 = vector.extract_strided_slice %5 {offsets = [10, 0], sizes = [1, 1], strides = [1, 1]} : vector<11x32xf32> to vector<1x1xf32>
    %c0_6 = arith.constant 0 : index
    %c0_7 = arith.constant 0 : index
    %17 = vector.load %arg4[%c0_6, %c0_7] : memref<40x64xf32, #tpu.memory_space<vmem>>, vector<32x64xf32>
    %c32 = arith.constant 32 : index
    %c0_8 = arith.constant 0 : index
    %18 = vector.load %arg4[%c32, %c0_8] : memref<40x64xf32, #tpu.memory_space<vmem>>, vector<1x64xf32>
    %c0_9 = arith.constant 0 : index
    %c0_10 = arith.constant 0 : index
    %19 = vector.load %arg5[%c0_9, %c0_10] : memref<32x8xf32, #tpu.memory_space<vmem>>, vector<32x8xf32>
    %c0_11 = arith.constant 0 : index
    %c0_12 = arith.constant 0 : index
    %20 = vector.load %arg6[%c0_11, %c0_12] : memref<8x32xf32, #tpu.memory_space<vmem>>, vector<8x32xf32>
    %c0_13 = arith.constant 0 : index
    %c0_14 = arith.constant 0 : index
    %c0_15 = arith.constant 0 : index
    %21 = vector.load %arg1[%c0_13, %c0_14, %c0_15] : memref<2x8x16xf32, #tpu.memory_space<vmem>>, vector<2x8x16xf32>
    %22 = vector.shape_cast %21 : vector<2x8x16xf32> to vector<16x16xf32>
    %c0_16 = arith.constant 0 : index
    %c0_17 = arith.constant 0 : index
    %c0_18 = arith.constant 0 : index
    %23 = vector.load %arg2[%c0_16, %c0_17, %c0_18] : memref<2x8x32xf32, #tpu.memory_space<vmem>>, vector<2x8x32xf32>
    %24 = vector.shape_cast %23 : vector<2x8x32xf32> to vector<16x32xf32>
    %cst = arith.constant dense<0.000000e+00> : vector<16x32xf32>
    %25 = tpu.matmul %22, %0, %cst {dimension_numbers = #tpu.dot_dimension_numbers<[1], [0], [0], [1], [0, 0, 1, 1], [], []>} : vector<16x16xf32>, vector<16x32xf32>, vector<16x32xf32> -> vector<16x32xf32>
    %26 = vector.broadcast %6 : vector<1x32xf32> to vector<16x32xf32>
    %27 = arith.addf %25, %26 : vector<16x32xf32>
    %cst_19 = arith.constant dense<0.000000e+00> : vector<16xf32>
    %28 = vector.multi_reduction <add>, %27, %cst_19 [1] : vector<16x32xf32> to vector<16xf32>
    %29 = vector.shape_cast %28 : vector<16xf32> to vector<16x1xf32>
    %cst_20 = arith.constant 3.200000e+01 : f32
    %30 = vector.broadcast %cst_20 : f32 to vector<16x1xf32>
    %31 = arith.divf %29, %30 : vector<16x1xf32>
    %32 = vector.broadcast %31 : vector<16x1xf32> to vector<16x32xf32>
    %33 = arith.subf %27, %32 : vector<16x32xf32>
    %34 = arith.mulf %33, %33 : vector<16x32xf32>
    %cst_21 = arith.constant dense<0.000000e+00> : vector<16xf32>
    %35 = vector.multi_reduction <add>, %34, %cst_21 [1] : vector<16x32xf32> to vector<16xf32>
    %36 = vector.shape_cast %35 : vector<16xf32> to vector<16x1xf32>
    %cst_22 = arith.constant 3.200000e+01 : f32
    %37 = vector.broadcast %cst_22 : f32 to vector<16x1xf32>
    %38 = arith.divf %36, %37 : vector<16x1xf32>
    %39 = vector.broadcast %31 : vector<16x1xf32> to vector<16x32xf32>
    %40 = arith.subf %27, %39 : vector<16x32xf32>
    %cst_23 = arith.constant 9.99999974E-6 : f32
    %41 = vector.broadcast %cst_23 : f32 to vector<16x1xf32>
    %42 = arith.addf %38, %41 : vector<16x1xf32>
    %43 = math.rsqrt %42 : vector<16x1xf32>
    %44 = vector.broadcast %43 : vector<16x1xf32> to vector<16x32xf32>
    %45 = arith.mulf %40, %44 : vector<16x32xf32>
    %46 = vector.broadcast %7 : vector<1x32xf32> to vector<16x32xf32>
    %47 = arith.mulf %45, %46 : vector<16x32xf32>
    %48 = vector.broadcast %8 : vector<1x32xf32> to vector<16x32xf32>
    %49 = arith.addf %47, %48 : vector<16x32xf32>
    %cst_24 = arith.constant 5.000000e-01 : f32
    %50 = vector.broadcast %cst_24 : f32 to vector<16x32xf32>
    %51 = arith.mulf %50, %49 : vector<16x32xf32>
    %cst_25 = arith.constant 0.707106769 : f32
    %52 = vector.broadcast %cst_25 : f32 to vector<16x32xf32>
    %53 = arith.mulf %49, %52 : vector<16x32xf32>
    %cst_26 = arith.constant 0.000000e+00 : f32
    %54 = vector.broadcast %cst_26 : f32 to vector<16x32xf32>
    %55 = arith.cmpf oge, %53, %54 : vector<16x32xf32>
    %cst_27 = arith.constant 1.000000e+00 : f32
    %cst_28 = arith.constant -1.000000e+00 : f32
    %56 = vector.broadcast %cst_27 : f32 to vector<16x32xf32>
    %57 = vector.broadcast %cst_28 : f32 to vector<16x32xf32>
    %58 = arith.select %55, %56, %57 : vector<16x32xi1>, vector<16x32xf32>
    %59 = math.absf %53 : vector<16x32xf32>
    %cst_29 = arith.constant 0.327591091 : f32
    %60 = vector.broadcast %cst_29 : f32 to vector<16x32xf32>
    %61 = arith.mulf %60, %59 : vector<16x32xf32>
    %cst_30 = arith.constant 1.000000e+00 : f32
    %62 = vector.broadcast %cst_30 : f32 to vector<16x32xf32>
    %63 = arith.addf %62, %61 : vector<16x32xf32>
    %cst_31 = arith.constant 1.000000e+00 : f32
    %64 = vector.broadcast %cst_31 : f32 to vector<16x32xf32>
    %65 = arith.divf %64, %63 : vector<16x32xf32>
    %cst_32 = arith.constant 1.06140542 : f32
    %66 = vector.broadcast %cst_32 : f32 to vector<16x32xf32>
    %67 = arith.mulf %66, %65 : vector<16x32xf32>
    %cst_33 = arith.constant -1.45315206 : f32
    %68 = vector.broadcast %cst_33 : f32 to vector<16x32xf32>
    %69 = arith.addf %67, %68 : vector<16x32xf32>
    %70 = arith.mulf %69, %65 : vector<16x32xf32>
    %cst_34 = arith.constant 1.42141378 : f32
    %71 = vector.broadcast %cst_34 : f32 to vector<16x32xf32>
    %72 = arith.addf %70, %71 : vector<16x32xf32>
    %73 = arith.mulf %72, %65 : vector<16x32xf32>
    %cst_35 = arith.constant -0.284496725 : f32
    %74 = vector.broadcast %cst_35 : f32 to vector<16x32xf32>
    %75 = arith.addf %73, %74 : vector<16x32xf32>
    %76 = arith.mulf %75, %65 : vector<16x32xf32>
    %cst_36 = arith.constant 0.254829586 : f32
    %77 = vector.broadcast %cst_36 : f32 to vector<16x32xf32>
    %78 = arith.addf %76, %77 : vector<16x32xf32>
    %79 = arith.mulf %78, %65 : vector<16x32xf32>
    %cst_37 = arith.constant 0.000000e+00 : f32
    %80 = vector.broadcast %cst_37 : f32 to vector<16x32xf32>
    %81 = arith.subf %80, %59 : vector<16x32xf32>
    %82 = arith.mulf %81, %59 : vector<16x32xf32>
    %83 = math.exp %82 : vector<16x32xf32>
    %84 = arith.mulf %79, %83 : vector<16x32xf32>
    %cst_38 = arith.constant 1.000000e+00 : f32
    %85 = vector.broadcast %cst_38 : f32 to vector<16x32xf32>
    %86 = arith.subf %85, %84 : vector<16x32xf32>
    %87 = arith.mulf %58, %86 : vector<16x32xf32>
    %cst_39 = arith.constant 1.000000e+00 : f32
    %88 = vector.broadcast %cst_39 : f32 to vector<16x32xf32>
    %89 = arith.addf %88, %87 : vector<16x32xf32>
    %90 = arith.mulf %51, %89 : vector<16x32xf32>
    %cst_40 = arith.constant dense<0.000000e+00> : vector<16x32xf32>
    %91 = tpu.matmul %90, %1, %cst_40 {dimension_numbers = #tpu.dot_dimension_numbers<[1], [0], [0], [1], [0, 0, 1, 1], [], []>} : vector<16x32xf32>, vector<32x32xf32>, vector<16x32xf32> -> vector<16x32xf32>
    %92 = vector.broadcast %9 : vector<1x32xf32> to vector<16x32xf32>
    %93 = arith.addf %91, %92 : vector<16x32xf32>
    %cst_41 = arith.constant dense<0.000000e+00> : vector<16x32xf32>
    %94 = tpu.matmul %24, %2, %cst_41 {dimension_numbers = #tpu.dot_dimension_numbers<[1], [0], [0], [1], [0, 0, 1, 1], [], []>} : vector<16x32xf32>, vector<32x32xf32>, vector<16x32xf32> -> vector<16x32xf32>
    %95 = vector.broadcast %10 : vector<1x32xf32> to vector<16x32xf32>
    %96 = arith.addf %94, %95 : vector<16x32xf32>
    %cst_42 = arith.constant dense<0.000000e+00> : vector<16x64xf32>
    %97 = tpu.matmul %93, %17, %cst_42 {dimension_numbers = #tpu.dot_dimension_numbers<[1], [0], [0], [1], [0, 0, 1, 1], [], []>} : vector<16x32xf32>, vector<32x64xf32>, vector<16x64xf32> -> vector<16x64xf32>
    %98 = vector.broadcast %18 : vector<1x64xf32> to vector<16x64xf32>
    %99 = arith.addf %97, %98 : vector<16x64xf32>
    %100 = vector.extract_strided_slice %99 {offsets = [0, 0], sizes = [16, 32], strides = [1, 1]} : vector<16x64xf32> to vector<16x32xf32>
    %101 = vector.extract_strided_slice %99 {offsets = [0, 32], sizes = [16, 32], strides = [1, 1]} : vector<16x64xf32> to vector<16x32xf32>
    %102 = vector.shape_cast %96 : vector<16x32xf32> to vector<2x8x32xf32>
    %103 = vector.shape_cast %100 : vector<16x32xf32> to vector<2x8x32xf32>
    %104 = vector.shape_cast %101 : vector<16x32xf32> to vector<2x8x32xf32>
    %105 = vector.extract_strided_slice %103 {offsets = [0, 0, 0], sizes = [2, 1, 32], strides = [1, 1, 1]} : vector<2x8x32xf32> to vector<2x1x32xf32>
    %106 = vector.broadcast %105 : vector<2x1x32xf32> to vector<2x8x32xf32>
    %107 = arith.mulf %102, %106 : vector<2x8x32xf32>
    %108 = vector.shape_cast %107 : vector<2x8x32xf32> to vector<16x32xf32>
    %cst_43 = arith.constant dense<0.000000e+00> : vector<16x8xf32>
    %109 = tpu.matmul %108, %19, %cst_43 {dimension_numbers = #tpu.dot_dimension_numbers<[1], [0], [0], [1], [0, 0, 1, 1], [], []>} : vector<16x32xf32>, vector<32x8xf32>, vector<16x8xf32> -> vector<16x8xf32>
    %110 = vector.extract_strided_slice %103 {offsets = [0, 1, 0], sizes = [2, 1, 32], strides = [1, 1, 1]} : vector<2x8x32xf32> to vector<2x1x32xf32>
    %111 = vector.broadcast %110 : vector<2x1x32xf32> to vector<2x8x32xf32>
    %112 = arith.mulf %102, %111 : vector<2x8x32xf32>
    %113 = vector.shape_cast %112 : vector<2x8x32xf32> to vector<16x32xf32>
    %cst_44 = arith.constant dense<0.000000e+00> : vector<16x8xf32>
    %114 = tpu.matmul %113, %19, %cst_44 {dimension_numbers = #tpu.dot_dimension_numbers<[1], [0], [0], [1], [0, 0, 1, 1], [], []>} : vector<16x32xf32>, vector<32x8xf32>, vector<16x8xf32> -> vector<16x8xf32>
    %115 = vector.extract_strided_slice %103 {offsets = [0, 2, 0], sizes = [2, 1, 32], strides = [1, 1, 1]} : vector<2x8x32xf32> to vector<2x1x32xf32>
    %116 = vector.broadcast %115 : vector<2x1x32xf32> to vector<2x8x32xf32>
    %117 = arith.mulf %102, %116 : vector<2x8x32xf32>
    %118 = vector.shape_cast %117 : vector<2x8x32xf32> to vector<16x32xf32>
    %cst_45 = arith.constant dense<0.000000e+00> : vector<16x8xf32>
    %119 = tpu.matmul %118, %19, %cst_45 {dimension_numbers = #tpu.dot_dimension_numbers<[1], [0], [0], [1], [0, 0, 1, 1], [], []>} : vector<16x32xf32>, vector<32x8xf32>, vector<16x8xf32> -> vector<16x8xf32>
    %120 = vector.extract_strided_slice %103 {offsets = [0, 3, 0], sizes = [2, 1, 32], strides = [1, 1, 1]} : vector<2x8x32xf32> to vector<2x1x32xf32>
    %121 = vector.broadcast %120 : vector<2x1x32xf32> to vector<2x8x32xf32>
    %122 = arith.mulf %102, %121 : vector<2x8x32xf32>
    %123 = vector.shape_cast %122 : vector<2x8x32xf32> to vector<16x32xf32>
    %cst_46 = arith.constant dense<0.000000e+00> : vector<16x8xf32>
    %124 = tpu.matmul %123, %19, %cst_46 {dimension_numbers = #tpu.dot_dimension_numbers<[1], [0], [0], [1], [0, 0, 1, 1], [], []>} : vector<16x32xf32>, vector<32x8xf32>, vector<16x8xf32> -> vector<16x8xf32>
    %125 = vector.extract_strided_slice %103 {offsets = [0, 4, 0], sizes = [2, 1, 32], strides = [1, 1, 1]} : vector<2x8x32xf32> to vector<2x1x32xf32>
    %126 = vector.broadcast %125 : vector<2x1x32xf32> to vector<2x8x32xf32>
    %127 = arith.mulf %102, %126 : vector<2x8x32xf32>
    %128 = vector.shape_cast %127 : vector<2x8x32xf32> to vector<16x32xf32>
    %cst_47 = arith.constant dense<0.000000e+00> : vector<16x8xf32>
    %129 = tpu.matmul %128, %19, %cst_47 {dimension_numbers = #tpu.dot_dimension_numbers<[1], [0], [0], [1], [0, 0, 1, 1], [], []>} : vector<16x32xf32>, vector<32x8xf32>, vector<16x8xf32> -> vector<16x8xf32>
    %130 = vector.extract_strided_slice %103 {offsets = [0, 5, 0], sizes = [2, 1, 32], strides = [1, 1, 1]} : vector<2x8x32xf32> to vector<2x1x32xf32>
    %131 = vector.broadcast %130 : vector<2x1x32xf32> to vector<2x8x32xf32>
    %132 = arith.mulf %102, %131 : vector<2x8x32xf32>
    %133 = vector.shape_cast %132 : vector<2x8x32xf32> to vector<16x32xf32>
    %cst_48 = arith.constant dense<0.000000e+00> : vector<16x8xf32>
    %134 = tpu.matmul %133, %19, %cst_48 {dimension_numbers = #tpu.dot_dimension_numbers<[1], [0], [0], [1], [0, 0, 1, 1], [], []>} : vector<16x32xf32>, vector<32x8xf32>, vector<16x8xf32> -> vector<16x8xf32>
    %135 = vector.extract_strided_slice %103 {offsets = [0, 6, 0], sizes = [2, 1, 32], strides = [1, 1, 1]} : vector<2x8x32xf32> to vector<2x1x32xf32>
    %136 = vector.broadcast %135 : vector<2x1x32xf32> to vector<2x8x32xf32>
    %137 = arith.mulf %102, %136 : vector<2x8x32xf32>
    %138 = vector.shape_cast %137 : vector<2x8x32xf32> to vector<16x32xf32>
    %cst_49 = arith.constant dense<0.000000e+00> : vector<16x8xf32>
    %139 = tpu.matmul %138, %19, %cst_49 {dimension_numbers = #tpu.dot_dimension_numbers<[1], [0], [0], [1], [0, 0, 1, 1], [], []>} : vector<16x32xf32>, vector<32x8xf32>, vector<16x8xf32> -> vector<16x8xf32>
    %140 = vector.extract_strided_slice %103 {offsets = [0, 7, 0], sizes = [2, 1, 32], strides = [1, 1, 1]} : vector<2x8x32xf32> to vector<2x1x32xf32>
    %141 = vector.broadcast %140 : vector<2x1x32xf32> to vector<2x8x32xf32>
    %142 = arith.mulf %102, %141 : vector<2x8x32xf32>
    %143 = vector.shape_cast %142 : vector<2x8x32xf32> to vector<16x32xf32>
    %cst_50 = arith.constant dense<0.000000e+00> : vector<16x8xf32>
    %144 = tpu.matmul %143, %19, %cst_50 {dimension_numbers = #tpu.dot_dimension_numbers<[1], [0], [0], [1], [0, 0, 1, 1], [], []>} : vector<16x32xf32>, vector<32x8xf32>, vector<16x8xf32> -> vector<16x8xf32>
    %145 = arith.maximumf %109, %114 : vector<16x8xf32>
    %146 = arith.maximumf %145, %119 : vector<16x8xf32>
    %147 = arith.maximumf %146, %124 : vector<16x8xf32>
    %148 = arith.maximumf %147, %129 : vector<16x8xf32>
    %149 = arith.maximumf %148, %134 : vector<16x8xf32>
    %150 = arith.maximumf %149, %139 : vector<16x8xf32>
    %151 = arith.maximumf %150, %144 : vector<16x8xf32>
    %152 = arith.subf %109, %151 : vector<16x8xf32>
    %153 = math.exp %152 : vector<16x8xf32>
    %154 = arith.subf %114, %151 : vector<16x8xf32>
    %155 = math.exp %154 : vector<16x8xf32>
    %156 = arith.subf %119, %151 : vector<16x8xf32>
    %157 = math.exp %156 : vector<16x8xf32>
    %158 = arith.subf %124, %151 : vector<16x8xf32>
    %159 = math.exp %158 : vector<16x8xf32>
    %160 = arith.subf %129, %151 : vector<16x8xf32>
    %161 = math.exp %160 : vector<16x8xf32>
    %162 = arith.subf %134, %151 : vector<16x8xf32>
    %163 = math.exp %162 : vector<16x8xf32>
    %164 = arith.subf %139, %151 : vector<16x8xf32>
    %165 = math.exp %164 : vector<16x8xf32>
    %166 = arith.subf %144, %151 : vector<16x8xf32>
    %167 = math.exp %166 : vector<16x8xf32>
    %168 = arith.addf %153, %155 : vector<16x8xf32>
    %169 = arith.addf %168, %157 : vector<16x8xf32>
    %170 = arith.addf %169, %159 : vector<16x8xf32>
    %171 = arith.addf %170, %161 : vector<16x8xf32>
    %172 = arith.addf %171, %163 : vector<16x8xf32>
    %173 = arith.addf %172, %165 : vector<16x8xf32>
    %174 = arith.addf %173, %167 : vector<16x8xf32>
    %175 = tpu.reciprocal %174 {approx = true} : vector<16x8xf32> -> vector<16x8xf32>
    %176 = arith.mulf %153, %175 : vector<16x8xf32>
    %cst_51 = arith.constant dense<0.000000e+00> : vector<16x32xf32>
    %177 = tpu.matmul %176, %20, %cst_51 {dimension_numbers = #tpu.dot_dimension_numbers<[1], [0], [0], [1], [0, 0, 1, 1], [], []>} : vector<16x8xf32>, vector<8x32xf32>, vector<16x32xf32> -> vector<16x32xf32>
    %178 = vector.shape_cast %177 : vector<16x32xf32> to vector<2x8x32xf32>
    %179 = vector.extract_strided_slice %104 {offsets = [0, 0, 0], sizes = [2, 1, 32], strides = [1, 1, 1]} : vector<2x8x32xf32> to vector<2x1x32xf32>
    %180 = vector.broadcast %179 : vector<2x1x32xf32> to vector<2x8x32xf32>
    %181 = arith.mulf %178, %180 : vector<2x8x32xf32>
    %182 = arith.mulf %155, %175 : vector<16x8xf32>
    %cst_52 = arith.constant dense<0.000000e+00> : vector<16x32xf32>
    %183 = tpu.matmul %182, %20, %cst_52 {dimension_numbers = #tpu.dot_dimension_numbers<[1], [0], [0], [1], [0, 0, 1, 1], [], []>} : vector<16x8xf32>, vector<8x32xf32>, vector<16x32xf32> -> vector<16x32xf32>
    %184 = vector.shape_cast %183 : vector<16x32xf32> to vector<2x8x32xf32>
    %185 = vector.extract_strided_slice %104 {offsets = [0, 1, 0], sizes = [2, 1, 32], strides = [1, 1, 1]} : vector<2x8x32xf32> to vector<2x1x32xf32>
    %186 = vector.broadcast %185 : vector<2x1x32xf32> to vector<2x8x32xf32>
    %187 = arith.mulf %184, %186 : vector<2x8x32xf32>
    %188 = arith.addf %181, %187 : vector<2x8x32xf32>
    %189 = arith.mulf %157, %175 : vector<16x8xf32>
    %cst_53 = arith.constant dense<0.000000e+00> : vector<16x32xf32>
    %190 = tpu.matmul %189, %20, %cst_53 {dimension_numbers = #tpu.dot_dimension_numbers<[1], [0], [0], [1], [0, 0, 1, 1], [], []>} : vector<16x8xf32>, vector<8x32xf32>, vector<16x32xf32> -> vector<16x32xf32>
    %191 = vector.shape_cast %190 : vector<16x32xf32> to vector<2x8x32xf32>
    %192 = vector.extract_strided_slice %104 {offsets = [0, 2, 0], sizes = [2, 1, 32], strides = [1, 1, 1]} : vector<2x8x32xf32> to vector<2x1x32xf32>
    %193 = vector.broadcast %192 : vector<2x1x32xf32> to vector<2x8x32xf32>
    %194 = arith.mulf %191, %193 : vector<2x8x32xf32>
    %195 = arith.addf %188, %194 : vector<2x8x32xf32>
    %196 = arith.mulf %159, %175 : vector<16x8xf32>
    %cst_54 = arith.constant dense<0.000000e+00> : vector<16x32xf32>
    %197 = tpu.matmul %196, %20, %cst_54 {dimension_numbers = #tpu.dot_dimension_numbers<[1], [0], [0], [1], [0, 0, 1, 1], [], []>} : vector<16x8xf32>, vector<8x32xf32>, vector<16x32xf32> -> vector<16x32xf32>
    %198 = vector.shape_cast %197 : vector<16x32xf32> to vector<2x8x32xf32>
    %199 = vector.extract_strided_slice %104 {offsets = [0, 3, 0], sizes = [2, 1, 32], strides = [1, 1, 1]} : vector<2x8x32xf32> to vector<2x1x32xf32>
    %200 = vector.broadcast %199 : vector<2x1x32xf32> to vector<2x8x32xf32>
    %201 = arith.mulf %198, %200 : vector<2x8x32xf32>
    %202 = arith.addf %195, %201 : vector<2x8x32xf32>
    %203 = arith.mulf %161, %175 : vector<16x8xf32>
    %cst_55 = arith.constant dense<0.000000e+00> : vector<16x32xf32>
    %204 = tpu.matmul %203, %20, %cst_55 {dimension_numbers = #tpu.dot_dimension_numbers<[1], [0], [0], [1], [0, 0, 1, 1], [], []>} : vector<16x8xf32>, vector<8x32xf32>, vector<16x32xf32> -> vector<16x32xf32>
    %205 = vector.shape_cast %204 : vector<16x32xf32> to vector<2x8x32xf32>
    %206 = vector.extract_strided_slice %104 {offsets = [0, 4, 0], sizes = [2, 1, 32], strides = [1, 1, 1]} : vector<2x8x32xf32> to vector<2x1x32xf32>
    %207 = vector.broadcast %206 : vector<2x1x32xf32> to vector<2x8x32xf32>
    %208 = arith.mulf %205, %207 : vector<2x8x32xf32>
    %209 = arith.addf %202, %208 : vector<2x8x32xf32>
    %210 = arith.mulf %163, %175 : vector<16x8xf32>
    %cst_56 = arith.constant dense<0.000000e+00> : vector<16x32xf32>
    %211 = tpu.matmul %210, %20, %cst_56 {dimension_numbers = #tpu.dot_dimension_numbers<[1], [0], [0], [1], [0, 0, 1, 1], [], []>} : vector<16x8xf32>, vector<8x32xf32>, vector<16x32xf32> -> vector<16x32xf32>
    %212 = vector.shape_cast %211 : vector<16x32xf32> to vector<2x8x32xf32>
    %213 = vector.extract_strided_slice %104 {offsets = [0, 5, 0], sizes = [2, 1, 32], strides = [1, 1, 1]} : vector<2x8x32xf32> to vector<2x1x32xf32>
    %214 = vector.broadcast %213 : vector<2x1x32xf32> to vector<2x8x32xf32>
    %215 = arith.mulf %212, %214 : vector<2x8x32xf32>
    %216 = arith.addf %209, %215 : vector<2x8x32xf32>
    %217 = arith.mulf %165, %175 : vector<16x8xf32>
    %cst_57 = arith.constant dense<0.000000e+00> : vector<16x32xf32>
    %218 = tpu.matmul %217, %20, %cst_57 {dimension_numbers = #tpu.dot_dimension_numbers<[1], [0], [0], [1], [0, 0, 1, 1], [], []>} : vector<16x8xf32>, vector<8x32xf32>, vector<16x32xf32> -> vector<16x32xf32>
    %219 = vector.shape_cast %218 : vector<16x32xf32> to vector<2x8x32xf32>
    %220 = vector.extract_strided_slice %104 {offsets = [0, 6, 0], sizes = [2, 1, 32], strides = [1, 1, 1]} : vector<2x8x32xf32> to vector<2x1x32xf32>
    %221 = vector.broadcast %220 : vector<2x1x32xf32> to vector<2x8x32xf32>
    %222 = arith.mulf %219, %221 : vector<2x8x32xf32>
    %223 = arith.addf %216, %222 : vector<2x8x32xf32>
    %224 = arith.mulf %167, %175 : vector<16x8xf32>
    %cst_58 = arith.constant dense<0.000000e+00> : vector<16x32xf32>
    %225 = tpu.matmul %224, %20, %cst_58 {dimension_numbers = #tpu.dot_dimension_numbers<[1], [0], [0], [1], [0, 0, 1, 1], [], []>} : vector<16x8xf32>, vector<8x32xf32>, vector<16x32xf32> -> vector<16x32xf32>
    %226 = vector.shape_cast %225 : vector<16x32xf32> to vector<2x8x32xf32>
    %227 = vector.extract_strided_slice %104 {offsets = [0, 7, 0], sizes = [2, 1, 32], strides = [1, 1, 1]} : vector<2x8x32xf32> to vector<2x1x32xf32>
    %228 = vector.broadcast %227 : vector<2x1x32xf32> to vector<2x8x32xf32>
    %229 = arith.mulf %226, %228 : vector<2x8x32xf32>
    %230 = arith.addf %223, %229 : vector<2x8x32xf32>
    %231 = vector.shape_cast %230 : vector<2x8x32xf32> to vector<16x32xf32>
    %cst_59 = arith.constant dense<0.000000e+00> : vector<16x32xf32>
    %232 = tpu.matmul %231, %3, %cst_59 {dimension_numbers = #tpu.dot_dimension_numbers<[1], [0], [0], [1], [0, 0, 1, 1], [], []>} : vector<16x32xf32>, vector<32x32xf32>, vector<16x32xf32> -> vector<16x32xf32>
    %233 = vector.broadcast %11 : vector<1x32xf32> to vector<16x32xf32>
    %234 = arith.addf %232, %233 : vector<16x32xf32>
    %cst_60 = arith.constant dense<0.000000e+00> : vector<16x32xf32>
    %235 = tpu.matmul %234, %4, %cst_60 {dimension_numbers = #tpu.dot_dimension_numbers<[1], [0], [0], [1], [0, 0, 1, 1], [], []>} : vector<16x32xf32>, vector<32x32xf32>, vector<16x32xf32> -> vector<16x32xf32>
    %236 = vector.broadcast %12 : vector<1x32xf32> to vector<16x32xf32>
    %237 = arith.addf %235, %236 : vector<16x32xf32>
    %cst_61 = arith.constant dense<0.000000e+00> : vector<16xf32>
    %238 = vector.multi_reduction <add>, %237, %cst_61 [1] : vector<16x32xf32> to vector<16xf32>
    %239 = vector.shape_cast %238 : vector<16xf32> to vector<16x1xf32>
    %cst_62 = arith.constant 3.200000e+01 : f32
    %240 = vector.broadcast %cst_62 : f32 to vector<16x1xf32>
    %241 = arith.divf %239, %240 : vector<16x1xf32>
    %242 = vector.broadcast %241 : vector<16x1xf32> to vector<16x32xf32>
    %243 = arith.subf %237, %242 : vector<16x32xf32>
    %244 = arith.mulf %243, %243 : vector<16x32xf32>
    %cst_63 = arith.constant dense<0.000000e+00> : vector<16xf32>
    %245 = vector.multi_reduction <add>, %244, %cst_63 [1] : vector<16x32xf32> to vector<16xf32>
    %246 = vector.shape_cast %245 : vector<16xf32> to vector<16x1xf32>
    %cst_64 = arith.constant 3.200000e+01 : f32
    %247 = vector.broadcast %cst_64 : f32 to vector<16x1xf32>
    %248 = arith.divf %246, %247 : vector<16x1xf32>
    %249 = vector.broadcast %241 : vector<16x1xf32> to vector<16x32xf32>
    %250 = arith.subf %237, %249 : vector<16x32xf32>
    %cst_65 = arith.constant 9.99999974E-6 : f32
    %251 = vector.broadcast %cst_65 : f32 to vector<16x1xf32>
    %252 = arith.addf %248, %251 : vector<16x1xf32>
    %253 = math.rsqrt %252 : vector<16x1xf32>
    %254 = vector.broadcast %253 : vector<16x1xf32> to vector<16x32xf32>
    %255 = arith.mulf %250, %254 : vector<16x32xf32>
    %256 = vector.broadcast %13 : vector<1x32xf32> to vector<16x32xf32>
    %257 = arith.mulf %255, %256 : vector<16x32xf32>
    %258 = vector.broadcast %14 : vector<1x32xf32> to vector<16x32xf32>
    %259 = arith.addf %257, %258 : vector<16x32xf32>
    %cst_66 = arith.constant 5.000000e-01 : f32
    %260 = vector.broadcast %cst_66 : f32 to vector<16x32xf32>
    %261 = arith.mulf %260, %259 : vector<16x32xf32>
    %cst_67 = arith.constant 0.707106769 : f32
    %262 = vector.broadcast %cst_67 : f32 to vector<16x32xf32>
    %263 = arith.mulf %259, %262 : vector<16x32xf32>
    %cst_68 = arith.constant 0.000000e+00 : f32
    %264 = vector.broadcast %cst_68 : f32 to vector<16x32xf32>
    %265 = arith.cmpf oge, %263, %264 : vector<16x32xf32>
    %cst_69 = arith.constant 1.000000e+00 : f32
    %cst_70 = arith.constant -1.000000e+00 : f32
    %266 = vector.broadcast %cst_69 : f32 to vector<16x32xf32>
    %267 = vector.broadcast %cst_70 : f32 to vector<16x32xf32>
    %268 = arith.select %265, %266, %267 : vector<16x32xi1>, vector<16x32xf32>
    %269 = math.absf %263 : vector<16x32xf32>
    %cst_71 = arith.constant 0.327591091 : f32
    %270 = vector.broadcast %cst_71 : f32 to vector<16x32xf32>
    %271 = arith.mulf %270, %269 : vector<16x32xf32>
    %cst_72 = arith.constant 1.000000e+00 : f32
    %272 = vector.broadcast %cst_72 : f32 to vector<16x32xf32>
    %273 = arith.addf %272, %271 : vector<16x32xf32>
    %cst_73 = arith.constant 1.000000e+00 : f32
    %274 = vector.broadcast %cst_73 : f32 to vector<16x32xf32>
    %275 = arith.divf %274, %273 : vector<16x32xf32>
    %cst_74 = arith.constant 1.06140542 : f32
    %276 = vector.broadcast %cst_74 : f32 to vector<16x32xf32>
    %277 = arith.mulf %276, %275 : vector<16x32xf32>
    %cst_75 = arith.constant -1.45315206 : f32
    %278 = vector.broadcast %cst_75 : f32 to vector<16x32xf32>
    %279 = arith.addf %277, %278 : vector<16x32xf32>
    %280 = arith.mulf %279, %275 : vector<16x32xf32>
    %cst_76 = arith.constant 1.42141378 : f32
    %281 = vector.broadcast %cst_76 : f32 to vector<16x32xf32>
    %282 = arith.addf %280, %281 : vector<16x32xf32>
    %283 = arith.mulf %282, %275 : vector<16x32xf32>
    %cst_77 = arith.constant -0.284496725 : f32
    %284 = vector.broadcast %cst_77 : f32 to vector<16x32xf32>
    %285 = arith.addf %283, %284 : vector<16x32xf32>
    %286 = arith.mulf %285, %275 : vector<16x32xf32>
    %cst_78 = arith.constant 0.254829586 : f32
    %287 = vector.broadcast %cst_78 : f32 to vector<16x32xf32>
    %288 = arith.addf %286, %287 : vector<16x32xf32>
    %289 = arith.mulf %288, %275 : vector<16x32xf32>
    %cst_79 = arith.constant 0.000000e+00 : f32
    %290 = vector.broadcast %cst_79 : f32 to vector<16x32xf32>
    %291 = arith.subf %290, %269 : vector<16x32xf32>
    %292 = arith.mulf %291, %269 : vector<16x32xf32>
    %293 = math.exp %292 : vector<16x32xf32>
    %294 = arith.mulf %289, %293 : vector<16x32xf32>
    %cst_80 = arith.constant 1.000000e+00 : f32
    %295 = vector.broadcast %cst_80 : f32 to vector<16x32xf32>
    %296 = arith.subf %295, %294 : vector<16x32xf32>
    %297 = arith.mulf %268, %296 : vector<16x32xf32>
    %cst_81 = arith.constant 1.000000e+00 : f32
    %298 = vector.broadcast %cst_81 : f32 to vector<16x32xf32>
    %299 = arith.addf %298, %297 : vector<16x32xf32>
    %300 = arith.mulf %261, %299 : vector<16x32xf32>
    %301 = vector.shape_cast %300 : vector<16x32xf32> to vector<2x8x32xf32>
    %302 = vector.shape_cast %15 : vector<1x32xf32> to vector<1x1x32xf32>
    %303 = vector.broadcast %302 : vector<1x1x32xf32> to vector<2x8x32xf32>
    %304 = arith.mulf %301, %303 : vector<2x8x32xf32>
    %cst_82 = arith.constant dense<0.000000e+00> : vector<2x8xf32>
    %305 = vector.multi_reduction <add>, %304, %cst_82 [2] : vector<2x8x32xf32> to vector<2x8xf32>
    %306 = vector.broadcast %16 : vector<1x1xf32> to vector<2x8xf32>
    %307 = arith.addf %305, %306 : vector<2x8xf32>
    %c0_83 = arith.constant 0 : index
    %c0_84 = arith.constant 0 : index
    %308 = vector.load %arg7[%c0_83, %c0_84] : memref<2x8xf32, #tpu.memory_space<vmem>>, vector<2x8xf32>
    tpu.vector_store %arg7[%c0_83, %c0_84], %307 {strides = array<i32>} : memref<2x8xf32, #tpu.memory_space<vmem>>, vector<2x8xf32>,
    return
  }
  func.func @transform_0(%arg0: i32) -> (i32, i32, i32) {
    %c0_i32 = arith.constant 0 : i32
    %c0_i32_0 = arith.constant 0 : i32
    %c0_i32_1 = arith.constant 0 : i32
    return %arg0, %c0_i32, %c0_i32_0 : i32, i32, i32
  }
  func.func @transform_1(%arg0: i32) -> (i32, i32, i32) {
    %c0_i32 = arith.constant 0 : i32
    %c0_i32_0 = arith.constant 0 : i32
    %c0_i32_1 = arith.constant 0 : i32
    return %arg0, %c0_i32, %c0_i32_0 : i32, i32, i32
  }
  func.func @transform_2(%arg0: i32) -> (i32, i32) {
    %c0_i32 = arith.constant 0 : i32
    %c0_i32_0 = arith.constant 0 : i32
    %c0_i32_1 = arith.constant 0 : i32
    return %c0_i32, %c0_i32_0 : i32, i32
  }
  func.func @transform_3(%arg0: i32) -> (i32, i32) {
    %c0_i32 = arith.constant 0 : i32
    %c0_i32_0 = arith.constant 0 : i32
    %c0_i32_1 = arith.constant 0 : i32
    return %c0_i32, %c0_i32_0 : i32, i32
  }
  func.func @transform_4(%arg0: i32) -> (i32, i32) {
    %c0_i32 = arith.constant 0 : i32
    %c0_i32_0 = arith.constant 0 : i32
    %c0_i32_1 = arith.constant 0 : i32
    return %c0_i32, %c0_i32_0 : i32, i32
  }
  func.func @transform_5(%arg0: i32) -> (i32, i32) {
    %c0_i32 = arith.constant 0 : i32
    %c0_i32_0 = arith.constant 0 : i32
    %c0_i32_1 = arith.constant 0 : i32
    return %c0_i32, %c0_i32_0 : i32, i32
  }
  func.func @transform_6(%arg0: i32) -> (i32, i32) {
    %c0_i32 = arith.constant 0 : i32
    %c0_i32_0 = arith.constant 0 : i32
    return %arg0, %c0_i32 : i32, i32
  }
}

</mosaic_0001>

<llo_original>
// kernel: cross_attn_decoder.1
$region0: #{cross_attn_decoder.1}
  #allocation0 [shape = 'u32[]', space=smem, size = 0x4, offset = 0x4, fixed_abs, tag = 'smem constant byte address 0x4 - core index']
  #allocation1 [shape = 'u32[144,128]{1,0:T(1,128)}', space=vmem, size = 0x12000, scoped, tag = 'internal scratch']
  %s0 = inlined_call_operand.vmem [shape: f32[2,8,16], index: 0, kind: input, shape index: {}]
  %s1 = inlined_call_operand.vmem [shape: f32[2,8,32], index: 1, kind: input, shape index: {}]
  %s2 = inlined_call_operand.vmem [shape: f32[160,32], index: 2, kind: input, shape index: {}]
  %s3 = inlined_call_operand.vmem [shape: f32[40,64], index: 3, kind: input, shape index: {}]
  %s4 = inlined_call_operand.vmem [shape: f32[32,8], index: 4, kind: input, shape index: {}]
  %s5 = inlined_call_operand.vmem [shape: f32[8,32], index: 5, kind: input, shape index: {}]
  %s6 = inlined_call_operand.hbm [shape: f32[2,8], index: 6, kind: output, shape index: {}]
  %s7 = sld [smem:[#allocation0]]
  $region34: #{cross_attn_decoder.1} parent=0
    _
  %s9 = ssub.s32 1, %s7
  %s10 = scalar_select 0, %s9, %s7
  $region1: #{cross_attn_decoder.1} parent=0
    #allocation2 [shape = 'u8[1024]{0}', space=vmem, size = 0x400, scoped, tag = 'output window, operand 0, single buffered']
    #allocation3 [shape = 's32[1]{0}', space=sflag, size = 0x4, scoped, tag = 'scoped memory for cross_attn_decoder.1']
    %11 = vsyncpa [#allocation3], 0
    // Predicated region
    $region2: #{cross_attn_decoder.1} parent=1 // pred_check
      _
    $region3: #{cross_attn_decoder.1} parent=1 // pred_check_branch
      %13 = sbr.rel (0) target = $region5
    $region4: #{cross_attn_decoder.1} parent=1 // pred_region
      _
    $region5: #{cross_attn_decoder.1} parent=1 // pred_fallthru
      _
    // Predicated region
    $region6: #{cross_attn_decoder.1} parent=1 // pred_check
      _
    $region7: #{cross_attn_decoder.1} parent=1 // pred_check_branch
      %15 = sbr.rel (0) target = $region9
    $region8: #{cross_attn_decoder.1} parent=1 // pred_region
      _
    $region9: #{cross_attn_decoder.1} parent=1 // pred_fallthru
      _
    // Predicated region
    $region10: #{cross_attn_decoder.1} parent=1 // pred_check
      _
    $region11: #{cross_attn_decoder.1} parent=1 // pred_check_branch
      %17 = sbr.rel (0) target = $region13
    $region12: #{cross_attn_decoder.1} parent=1 // pred_region
      _
    $region13: #{cross_attn_decoder.1} parent=1 // pred_fallthru
      _
    // Predicated region
    $region14: #{cross_attn_decoder.1} parent=1 // pred_check
      _
    $region15: #{cross_attn_decoder.1} parent=1 // pred_check_branch
      %19 = sbr.rel (0) target = $region17
    $region16: #{cross_attn_decoder.1} parent=1 // pred_region
      _
    $region17: #{cross_attn_decoder.1} parent=1 // pred_fallthru
      _
    // Predicated region
    $region18: #{cross_attn_decoder.1} parent=1 // pred_check
      _
    $region19: #{cross_attn_decoder.1} parent=1 // pred_check_branch
      %21 = sbr.rel (0) target = $region21
    $region20: #{cross_attn_decoder.1} parent=1 // pred_region
      _
    $region21: #{cross_attn_decoder.1} parent=1 // pred_fallthru
      _
    // Predicated region
    $region22: #{cross_attn_decoder.1} parent=1 // pred_check
      _
    $region23: #{cross_attn_decoder.1} parent=1 // pred_check_branch
      %23 = sbr.rel (0) target = $region25
    $region24: #{cross_attn_decoder.1} parent=1 // pred_region
      _
    $region25: #{cross_attn_decoder.1} parent=1 // pred_fallthru
      _
    %v24 = vld [vmem:[%s2] sm:$0xff]
    %v25 = vld [vmem:[%s2 + $0x8] sm:$0xff]
    %v26 = vld [vmem:[%s2 + $0x10] sm:$0xff]
    %v27 = vld [vmem:[%s2 + $0x18] sm:$0xff]
    %v28 = vld [vmem:[%s2 + $0x20] sm:$0xff]
    %v29 = vld [vmem:[%s2 + $0x28] sm:$0xff]
    %v30 = vld [vmem:[%s2 + $0x30] sm:$0xff]
    %v31 = vld [vmem:[%s2 + $0x38] sm:$0xff]
    %v32 = vld [vmem:[%s2 + $0x40] sm:$0xff]
    %v33 = vld [vmem:[%s2 + $0x48] sm:$0xff]
    %v34 = vld [vmem:[%s2 + $0x50] sm:$0xff]
    %v35 = vld [vmem:[%s2 + $0x58] sm:$0xff]
    %v36 = vld [vmem:[%s2 + $0x60] sm:$0xff]
    %v37 = vld [vmem:[%s2 + $0x68] sm:$0xff]
    %v38 = vld [vmem:[%s2 + $0x70] sm:$0xff]
    %v39 = vld [vmem:[%s2 + $0x78] sm:$0xff]
    %v40 = vld [vmem:[%s2 + $0x80] sm:$0xff]
    %v41 = vld [vmem:[%s2 + $0x88] sm:$0xff]
    %v42 = vld [vmem:[%s2 + $0x90] sm:$0xff]
    %v43 = vld [vmem:[%s2 + $0x98] sm:$0x7]
    %v44 = vld [vmem:[%s3] sm:$0xff]
    %v45 = vld [vmem:[%s3 + $0x8] sm:$0xff]
    %v46 = vld [vmem:[%s3 + $0x10] sm:$0xff]
    %v47 = vld [vmem:[%s3 + $0x18] sm:$0xff]
    %v48 = vld [vmem:[%s3 + $0x20] sm:$0x1]
    %v49 = vld [vmem:[%s4] sm:$0xff]
    %v50 = vld [vmem:[%s4 + $0x8] sm:$0xff]
    %v51 = vld [vmem:[%s4 + $0x10] sm:$0xff]
    %v52 = vld [vmem:[%s4 + $0x18] sm:$0xff]
    %v53 = vld [vmem:[%s5] sm:$0xff]
    %v54 = vld [vmem:[%s0] sm:$0xff]
    %v55 = vld [vmem:[%s0 + $0x8] sm:$0xff]
    %v56 = vld [vmem:[%s1] sm:$0xff]
    %v57 = vld [vmem:[%s1 + $0x8] sm:$0xff]
    %v58 = vlaneseq
    %v59 = vshrl.u32 %v58, 7
    %v60 = vsub.s32 0, %v59
    %v61 = vrot.slane %v42, %v60
    %vm62 = vcmask 130048
    %v64 = vsel %vm62, %v54, 0
    %v67 = vsel %vm62, %v55, 0
    %69 = vmatprep.subr.mxu0 0.0
    %70 = vmatpush1.msra.mxu0 %v24
    %71 = vmatprep.subr.mxu0 0.0
    %72 = vmatpush1.msra.mxu0 %v25
    %73 = vmatprep.subr.mxu0 0.0
    %74 = vmatpush1.msra.mxu0 0.0
    %75 = vmatprep.subr.mxu0 0.0
    %76 = vmatpush1.msra.mxu0 0.0
    %77 = vmatprep.subr.mxu0 0.0
    %78 = vmatpush1.msra.mxu0 0.0
    %79 = vmatprep.subr.mxu0 0.0
    %80 = vmatpush1.msra.mxu0 0.0
    %81 = vmatprep.subr.mxu0 0.0
    %82 = vmatpush1.msra.mxu0 0.0
    %83 = vmatprep.subr.mxu0 0.0
    %84 = vmatpush1.msra.mxu0 0.0
    %85 = vmatprep.subr.mxu0 0.0
    %86 = vmatpush1.msra.mxu0 0.0
    %87 = vmatprep.subr.mxu0 0.0
    %88 = vmatpush1.msra.mxu0 0.0
    %89 = vmatprep.subr.mxu0 0.0
    %90 = vmatpush1.msra.mxu0 0.0
    %91 = vmatprep.subr.mxu0 0.0
    %92 = vmatpush1.msra.mxu0 0.0
    %93 = vmatprep.subr.mxu0 0.0
    %94 = vmatpush1.msra.mxu0 0.0
    %95 = vmatprep.subr.mxu0 0.0
    %96 = vmatpush1.msra.mxu0 0.0
    %97 = vmatprep.subr.mxu0 0.0
    %98 = vmatpush1.msra.mxu0 0.0
    %99 = vmatprep.subr.mxu0 0.0
    %100 = vmatpush1.msra.mxu0 0.0
    %101 = vmatprep.subr.mxu0 0.0
    %102 = vmatpush1.msra.mxu0 0.0
    %103 = vmatprep.subr.mxu0 0.0
    %104 = vmatpush1.msra.mxu0 0.0
    %105 = vmatprep.subr.mxu0 0.0
    %106 = vmatpush1.msra.mxu0 0.0
    %107 = vmatprep.subr.mxu0 0.0
    %108 = vmatpush1.msra.mxu0 0.0
    %109 = vmatprep.subr.mxu0 0.0
    %110 = vmatpush1.msra.mxu0 0.0
    %111 = vmatprep.subr.mxu0 0.0
    %112 = vmatpush1.msra.mxu0 0.0
    %113 = vmatprep.subr.mxu0 0.0
    %114 = vmatpush1.msra.mxu0 0.0
    %115 = vmatprep.subr.mxu0 0.0
    %116 = vmatpush1.msra.mxu0 0.0
    %117 = vmatprep.subr.mxu0 0.0
    %118 = vmatpush1.msra.mxu0 0.0
    %119 = vmatprep.subr.mxu0 0.0
    %120 = vmatpush1.msra.mxu0 0.0
    %121 = vmatprep.subr.mxu0 0.0
    %122 = vmatpush1.msra.mxu0 0.0
    %123 = vmatprep.subr.mxu0 0.0
    %124 = vmatpush1.msra.mxu0 0.0
    %125 = vmatprep.subr.mxu0 0.0
    %126 = vmatpush1.msra.mxu0 0.0
    %127 = vmatprep.subr.mxu0 0.0
    %128 = vmatpush1.msra.mxu0 0.0
    %129 = vmatprep.subr.mxu0 0.0
    %130 = vmatpush1.msra.mxu0 0.0
    %131 = vmatprep.subr.mxu0 0.0
    %132 = vmatpush1.msra.mxu0 0.0
    %133 = vmatprep.mubr.f32.mxu0 0.0
    %134 = vmatmul.mubr.f32.gmra.mrb[0].mxu0 %v64
    %v135 = vpop.f32.mrb[0].mxu0
    %v136 = vadd.f32 %v61, %v135
    %v137 = vpop.f32.mrb[0].mxu0
    %138 = vmatprep.mubr.f32.mxu0 0.0
    %139 = vmatmul.mubr.f32.gmra.mrb[0].mxu0 %v67
    %v140 = vpop.f32.mrb[0].mxu0
    %v141 = vadd.f32 %v61, %v140
    %v142 = vpop.f32.mrb[0].mxu0
    %143 = vdwg.mxu0
    %vm144 = vcmask 261120
    %v145 = vsel %vm144, %v136, 0.0
    %146 = vadd.xlane.f32.xlu0 %v145
    %v147 = vpop.xlane.xlu0 %146
    %v148 = vsel %vm144, %v141, 0.0
    %149 = vadd.xlane.f32.xlu0 %v148
    %v150 = vpop.xlane.xlu0 %149
    %v151 = vrcp.pop 32.0
    %v152 = vmul.f32 %v147, %v151
    %v153 = vmul.f32 %v150, %v151
    %v154 = vsub.f32 %v136, %v152
    %v155 = vsub.f32 %v141, %v153
    %v156 = vmul.f32 %v154, %v154
    %v157 = vmul.f32 %v155, %v155
    %v158 = vsel %vm144, %v156, 0.0
    %159 = vadd.xlane.f32.xlu0 %v158
    %v160 = vpop.xlane.xlu0 %159
    %v161 = vsel %vm144, %v157, 0.0
    %162 = vadd.xlane.f32.xlu0 %v161
    %v163 = vpop.xlane.xlu0 %162
    %v164 = vmul.f32 %v160, %v151
    %v165 = vmul.f32 %v163, %v151
    %v166 = vadd.f32 %v164, 1e-05
    %v167 = vadd.f32 %v165, 1e-05
    %v168 = vrsqrt.pop %v166
    %v169 = vrsqrt.pop %v167
    %v170 = vmul.f32 %v154, %v168
    %v171 = vmul.f32 %v155, %v169
    %v172 = vlaneseq
    %v173 = vshrl.u32 %v172, 7
    %v174 = vsub.s32 1, %v173
    %v175 = vrot.slane %v42, %v174
    %v176 = vmul.f32 %v170, %v175
    %v177 = vmul.f32 %v171, %v175
    %v178 = vlaneseq
    %v179 = vshrl.u32 %v178, 7
    %v180 = vsub.s32 2, %v179
    %v181 = vrot.slane %v42, %v180
    %v182 = vadd.f32 %v176, %v181
    %v183 = vadd.f32 %v177, %v181
    %v184 = vmul.f32 %v182, 0.5
    %v185 = vmul.f32 %v183, 0.5
    %v186 = vmul.f32 %v182, 0.70710677
    %v187 = vmul.f32 %v183, 0.70710677
    %vm188 = vcmp.ge.f32.partialorder %v186, 0.0
    %vm189 = vcmp.ge.f32.partialorder %v187, 0.0
    %v190 = vsel %vm188, 1.0, -1.0
    %v191 = vsel %vm189, 1.0, -1.0
    %v192 = vand.u32 2147483647, %v186
    %v193 = vand.u32 2147483647, %v187
    %v194 = vmul.f32 %v192, 0.3275911
    %v195 = vmul.f32 %v193, 0.3275911
    %v196 = vadd.f32 %v194, 1.0
    %v197 = vadd.f32 %v195, 1.0
    %v198 = vrcp.pop %v196
    %v199 = vmul.f32 1.0, %v198
    %v200 = vrcp.pop %v197
    %v201 = vmul.f32 1.0, %v200
    %v202 = vmul.f32 %v199, 1.0614054
    %v203 = vmul.f32 %v201, 1.0614054
    %v204 = vadd.f32 %v202, -1.4531521
    %v205 = vadd.f32 %v203, -1.4531521
    %v206 = vmul.f32 %v204, %v199
    %v207 = vmul.f32 %v205, %v201
    %v208 = vadd.f32 %v206, 1.4214138
    %v209 = vadd.f32 %v207, 1.4214138
    %v210 = vmul.f32 %v208, %v199
    %v211 = vmul.f32 %v209, %v201
    %v212 = vadd.f32 %v210, -0.28449672
    %v213 = vadd.f32 %v211, -0.28449672
    %v214 = vmul.f32 %v212, %v199
    %v215 = vmul.f32 %v213, %v201
    %v216 = vadd.f32 %v214, 0.2548296
    %v217 = vadd.f32 %v215, 0.2548296
    %v218 = vmul.f32 %v216, %v199
    %v219 = vmul.f32 %v217, %v201
    %v220 = vsub.f32 0.0, %v192
    %v221 = vsub.f32 0.0, %v193
    %v222 = vmul.f32 %v220, %v192
    %v223 = vmul.f32 %v221, %v193
    %v224 = vmul.f32 %v222, 1.442695
    %v225 = vpow.pop %v224
    %v226 = vmul.f32 %v223, 1.442695
    %v227 = vpow.pop %v226
    %v228 = vmul.f32 %v218, %v225
    %v229 = vmul.f32 %v219, %v227
    %v230 = vsub.f32 1.0, %v228
    %v231 = vsub.f32 1.0, %v229
    %v232 = vmul.f32 %v190, %v230
    %v233 = vmul.f32 %v191, %v231
    %v234 = vadd.f32 %v232, 1.0
    %v235 = vadd.f32 %v233, 1.0
    %v236 = vmul.f32 %v184, %v234
    %v237 = vmul.f32 %v185, %v235
    %v238 = vlaneseq
    %v239 = vshrl.u32 %v238, 7
    %v240 = vsub.s32 3, %v239
    %v241 = vrot.slane %v42, %v240
    %v243 = vsel %vm144, %v236, 0
    %v246 = vsel %vm144, %v237, 0
    %248 = vmatprep.subr.mxu0 0.0
    %249 = vmatpush1.msra.mxu0 %v26
    %250 = vmatprep.subr.mxu0 0.0
    %251 = vmatpush1.msra.mxu0 %v27
    %252 = vmatprep.subr.mxu0 0.0
    %253 = vmatpush1.msra.mxu0 %v28
    %254 = vmatprep.subr.mxu0 0.0
    %255 = vmatpush1.msra.mxu0 %v29
    %256 = vmatprep.subr.mxu0 0.0
    %257 = vmatpush1.msra.mxu0 0.0
    %258 = vmatprep.subr.mxu0 0.0
    %259 = vmatpush1.msra.mxu0 0.0
    %260 = vmatprep.subr.mxu0 0.0
    %261 = vmatpush1.msra.mxu0 0.0
    %262 = vmatprep.subr.mxu0 0.0
    %263 = vmatpush1.msra.mxu0 0.0
    %264 = vmatprep.subr.mxu0 0.0
    %265 = vmatpush1.msra.mxu0 0.0
    %266 = vmatprep.subr.mxu0 0.0
    %267 = vmatpush1.msra.mxu0 0.0
    %268 = vmatprep.subr.mxu0 0.0
    %269 = vmatpush1.msra.mxu0 0.0
    %270 = vmatprep.subr.mxu0 0.0
    %271 = vmatpush1.msra.mxu0 0.0
    %272 = vmatprep.subr.mxu0 0.0
    %273 = vmatpush1.msra.mxu0 0.0
    %274 = vmatprep.subr.mxu0 0.0
    %275 = vmatpush1.msra.mxu0 0.0
    %276 = vmatprep.subr.mxu0 0.0
    %277 = vmatpush1.msra.mxu0 0.0
    %278 = vmatprep.subr.mxu0 0.0
    %279 = vmatpush1.msra.mxu0 0.0
    %280 = vmatprep.subr.mxu0 0.0
    %281 = vmatpush1.msra.mxu0 0.0
    %282 = vmatprep.subr.mxu0 0.0
    %283 = vmatpush1.msra.mxu0 0.0
    %284 = vmatprep.subr.mxu0 0.0
    %285 = vmatpush1.msra.mxu0 0.0
    %286 = vmatprep.subr.mxu0 0.0
    %287 = vmatpush1.msra.mxu0 0.0
    %288 = vmatprep.subr.mxu0 0.0
    %289 = vmatpush1.msra.mxu0 0.0
    %290 = vmatprep.subr.mxu0 0.0
    %291 = vmatpush1.msra.mxu0 0.0
    %292 = vmatprep.subr.mxu0 0.0
    %293 = vmatpush1.msra.mxu0 0.0
    %294 = vmatprep.subr.mxu0 0.0
    %295 = vmatpush1.msra.mxu0 0.0
    %296 = vmatprep.subr.mxu0 0.0
    %297 = vmatpush1.msra.mxu0 0.0
    %298 = vmatprep.subr.mxu0 0.0
    %299 = vmatpush1.msra.mxu0 0.0
    %300 = vmatprep.subr.mxu0 0.0
    %301 = vmatpush1.msra.mxu0 0.0
    %302 = vmatprep.subr.mxu0 0.0
    %303 = vmatpush1.msra.mxu0 0.0
    %304 = vmatprep.subr.mxu0 0.0
    %305 = vmatpush1.msra.mxu0 0.0
    %306 = vmatprep.subr.mxu0 0.0
    %307 = vmatpush1.msra.mxu0 0.0
    %308 = vmatprep.subr.mxu0 0.0
    %309 = vmatpush1.msra.mxu0 0.0
    %310 = vmatprep.subr.mxu0 0.0
    %311 = vmatpush1.msra.mxu0 0.0
    %312 = vmatprep.mubr.f32.mxu0 0.0
    %313 = vmatmul.mubr.f32.gmra.mrb[0].mxu0 %v243
    %v314 = vpop.f32.mrb[0].mxu0
    %v315 = vadd.f32 %v241, %v314
    %v316 = vpop.f32.mrb[0].mxu0
    %317 = vmatprep.mubr.f32.mxu0 0.0
    %318 = vmatmul.mubr.f32.gmra.mrb[0].mxu0 %v246
    %v319 = vpop.f32.mrb[0].mxu0
    %v320 = vadd.f32 %v241, %v319
    %v321 = vpop.f32.mrb[0].mxu0
    %322 = vdwg.mxu0
    %v323 = vlaneseq
    %v324 = vshrl.u32 %v323, 7
    %v325 = vsub.s32 4, %v324
    %v326 = vrot.slane %v42, %v325
    %v328 = vsel %vm144, %v56, 0
    %v331 = vsel %vm144, %v57, 0
    %333 = vmatprep.subr.mxu0 0.0
    %334 = vmatpush1.msra.mxu0 %v30
    %335 = vmatprep.subr.mxu0 0.0
    %336 = vmatpush1.msra.mxu0 %v31
    %337 = vmatprep.subr.mxu0 0.0
    %338 = vmatpush1.msra.mxu0 %v32
    %339 = vmatprep.subr.mxu0 0.0
    %340 = vmatpush1.msra.mxu0 %v33
    %341 = vmatprep.subr.mxu0 0.0
    %342 = vmatpush1.msra.mxu0 0.0
    %343 = vmatprep.subr.mxu0 0.0
    %344 = vmatpush1.msra.mxu0 0.0
    %345 = vmatprep.subr.mxu0 0.0
    %346 = vmatpush1.msra.mxu0 0.0
    %347 = vmatprep.subr.mxu0 0.0
    %348 = vmatpush1.msra.mxu0 0.0
    %349 = vmatprep.subr.mxu0 0.0
    %350 = vmatpush1.msra.mxu0 0.0
    %351 = vmatprep.subr.mxu0 0.0
    %352 = vmatpush1.msra.mxu0 0.0
    %353 = vmatprep.subr.mxu0 0.0
    %354 = vmatpush1.msra.mxu0 0.0
    %355 = vmatprep.subr.mxu0 0.0
    %356 = vmatpush1.msra.mxu0 0.0
    %357 = vmatprep.subr.mxu0 0.0
    %358 = vmatpush1.msra.mxu0 0.0
    %359 = vmatprep.subr.mxu0 0.0
    %360 = vmatpush1.msra.mxu0 0.0
    %361 = vmatprep.subr.mxu0 0.0
    %362 = vmatpush1.msra.mxu0 0.0
    %363 = vmatprep.subr.mxu0 0.0
    %364 = vmatpush1.msra.mxu0 0.0
    %365 = vmatprep.subr.mxu0 0.0
    %366 = vmatpush1.msra.mxu0 0.0
    %367 = vmatprep.subr.mxu0 0.0
    %368 = vmatpush1.msra.mxu0 0.0
    %369 = vmatprep.subr.mxu0 0.0
    %370 = vmatpush1.msra.mxu0 0.0
    %371 = vmatprep.subr.mxu0 0.0
    %372 = vmatpush1.msra.mxu0 0.0
    %373 = vmatprep.subr.mxu0 0.0
    %374 = vmatpush1.msra.mxu0 0.0
    %375 = vmatprep.subr.mxu0 0.0
    %376 = vmatpush1.msra.mxu0 0.0
    %377 = vmatprep.subr.mxu0 0.0
    %378 = vmatpush1.msra.mxu0 0.0
    %379 = vmatprep.subr.mxu0 0.0
    %380 = vmatpush1.msra.mxu0 0.0
    %381 = vmatprep.subr.mxu0 0.0
    %382 = vmatpush1.msra.mxu0 0.0
    %383 = vmatprep.subr.mxu0 0.0
    %384 = vmatpush1.msra.mxu0 0.0
    %385 = vmatprep.subr.mxu0 0.0
    %386 = vmatpush1.msra.mxu0 0.0
    %387 = vmatprep.subr.mxu0 0.0
    %388 = vmatpush1.msra.mxu0 0.0
    %389 = vmatprep.subr.mxu0 0.0
    %390 = vmatpush1.msra.mxu0 0.0
    %391 = vmatprep.subr.mxu0 0.0
    %392 = vmatpush1.msra.mxu0 0.0
    %393 = vmatprep.subr.mxu0 0.0
    %394 = vmatpush1.msra.mxu0 0.0
    %395 = vmatprep.subr.mxu0 0.0
    %396 = vmatpush1.msra.mxu0 0.0
    %397 = vmatprep.mubr.f32.mxu0 0.0
    %398 = vmatmul.mubr.f32.gmra.mrb[0].mxu0 %v328
    %v399 = vpop.f32.mrb[0].mxu0
    %v400 = vadd.f32 %v326, %v399
    %v401 = vpop.f32.mrb[0].mxu0
    %402 = vmatprep.mubr.f32.mxu0 0.0
    %403 = vmatmul.mubr.f32.gmra.mrb[0].mxu0 %v331
    %v404 = vpop.f32.mrb[0].mxu0
    %v405 = vadd.f32 %v326, %v404
    %v406 = vpop.f32.mrb[0].mxu0
    %407 = vdwg.mxu0
    %v408 = vlaneseq
    %v409 = vshrl.u32 %v408, 7
    %v410 = vsub.s32 0, %v409
    %v411 = vrot.slane %v48, %v410
    %v413 = vsel %vm144, %v315, 0
    %v416 = vsel %vm144, %v320, 0
    %418 = vmatprep.subr.mxu0 0.0
    %419 = vmatpush1.msra.mxu0 %v44
    %420 = vmatprep.subr.mxu0 0.0
    %421 = vmatpush1.msra.mxu0 %v45
    %422 = vmatprep.subr.mxu0 0.0
    %423 = vmatpush1.msra.mxu0 %v46
    %424 = vmatprep.subr.mxu0 0.0
    %425 = vmatpush1.msra.mxu0 %v47
    %426 = vmatprep.subr.mxu0 0.0
    %427 = vmatpush1.msra.mxu0 0.0
    %428 = vmatprep.subr.mxu0 0.0
    %429 = vmatpush1.msra.mxu0 0.0
    %430 = vmatprep.subr.mxu0 0.0
    %431 = vmatpush1.msra.mxu0 0.0
    %432 = vmatprep.subr.mxu0 0.0
    %433 = vmatpush1.msra.mxu0 0.0
    %434 = vmatprep.subr.mxu0 0.0
    %435 = vmatpush1.msra.mxu0 0.0
    %436 = vmatprep.subr.mxu0 0.0
    %437 = vmatpush1.msra.mxu0 0.0
    %438 = vmatprep.subr.mxu0 0.0
    %439 = vmatpush1.msra.mxu0 0.0
    %440 = vmatprep.subr.mxu0 0.0
    %441 = vmatpush1.msra.mxu0 0.0
    %442 = vmatprep.subr.mxu0 0.0
    %443 = vmatpush1.msra.mxu0 0.0
    %444 = vmatprep.subr.mxu0 0.0
    %445 = vmatpush1.msra.mxu0 0.0
    %446 = vmatprep.subr.mxu0 0.0
    %447 = vmatpush1.msra.mxu0 0.0
    %448 = vmatprep.subr.mxu0 0.0
    %449 = vmatpush1.msra.mxu0 0.0
    %450 = vmatprep.subr.mxu0 0.0
    %451 = vmatpush1.msra.mxu0 0.0
    %452 = vmatprep.subr.mxu0 0.0
    %453 = vmatpush1.msra.mxu0 0.0
    %454 = vmatprep.subr.mxu0 0.0
    %455 = vmatpush1.msra.mxu0 0.0
    %456 = vmatprep.subr.mxu0 0.0
    %457 = vmatpush1.msra.mxu0 0.0
    %458 = vmatprep.subr.mxu0 0.0
    %459 = vmatpush1.msra.mxu0 0.0
    %460 = vmatprep.subr.mxu0 0.0
    %461 = vmatpush1.msra.mxu0 0.0
    %462 = vmatprep.subr.mxu0 0.0
    %463 = vmatpush1.msra.mxu0 0.0
    %464 = vmatprep.subr.mxu0 0.0
    %465 = vmatpush1.msra.mxu0 0.0
    %466 = vmatprep.subr.mxu0 0.0
    %467 = vmatpush1.msra.mxu0 0.0
    %468 = vmatprep.subr.mxu0 0.0
    %469 = vmatpush1.msra.mxu0 0.0
    %470 = vmatprep.subr.mxu0 0.0
    %471 = vmatpush1.msra.mxu0 0.0
    %472 = vmatprep.subr.mxu0 0.0
    %473 = vmatpush1.msra.mxu0 0.0
    %474 = vmatprep.subr.mxu0 0.0
    %475 = vmatpush1.msra.mxu0 0.0
    %476 = vmatprep.subr.mxu0 0.0
    %477 = vmatpush1.msra.mxu0 0.0
    %478 = vmatprep.subr.mxu0 0.0
    %479 = vmatpush1.msra.mxu0 0.0
    %480 = vmatprep.subr.mxu0 0.0
    %481 = vmatpush1.msra.mxu0 0.0
    %482 = vmatprep.mubr.f32.mxu0 0.0
    %483 = vmatmul.mubr.f32.gmra.mrb[0].mxu0 %v413
    %v484 = vpop.f32.mrb[0].mxu0
    %v485 = vadd.f32 %v411, %v484
    %v486 = vpop.f32.mrb[0].mxu0
    %487 = vmatprep.mubr.f32.mxu0 0.0
    %488 = vmatmul.mubr.f32.gmra.mrb[0].mxu0 %v416
    %v489 = vpop.f32.mrb[0].mxu0
    %v490 = vadd.f32 %v411, %v489
    %v491 = vpop.f32.mrb[0].mxu0
    %492 = vdwg.mxu0
    %v493 = vlaneseq
    %v494 = vshrl.u32 %v493, 7
    %v495 = vsub.s32 0, %v494
    %v496 = vrot.slane %v485, %v495
    %v497 = vlaneseq
    %v498 = vshrl.u32 %v497, 7
    %v499 = vsub.s32 0, %v498
    %v500 = vrot.slane %v490, %v499
    %v501 = vmul.f32 %v400, %v496
    %v502 = vmul.f32 %v405, %v500
    %v504 = vsel %vm144, %v501, 0
    %v507 = vsel %vm144, %v502, 0
    %509 = vmatprep.subr.mxu0 0.0
    %510 = vmatpush1.msra.mxu0 %v49
    %511 = vmatprep.subr.mxu0 0.0
    %512 = vmatpush1.msra.mxu0 %v50
    %513 = vmatprep.subr.mxu0 0.0
    %514 = vmatpush1.msra.mxu0 %v51
    %515 = vmatprep.subr.mxu0 0.0
    %516 = vmatpush1.msra.mxu0 %v52
    %517 = vmatprep.subr.mxu0 0.0
    %518 = vmatpush1.msra.mxu0 0.0
    %519 = vmatprep.subr.mxu0 0.0
    %520 = vmatpush1.msra.mxu0 0.0
    %521 = vmatprep.subr.mxu0 0.0
    %522 = vmatpush1.msra.mxu0 0.0
    %523 = vmatprep.subr.mxu0 0.0
    %524 = vmatpush1.msra.mxu0 0.0
    %525 = vmatprep.subr.mxu0 0.0
    %526 = vmatpush1.msra.mxu0 0.0
    %527 = vmatprep.subr.mxu0 0.0
    %528 = vmatpush1.msra.mxu0 0.0
    %529 = vmatprep.subr.mxu0 0.0
    %530 = vmatpush1.msra.mxu0 0.0
    %531 = vmatprep.subr.mxu0 0.0
    %532 = vmatpush1.msra.mxu0 0.0
    %533 = vmatprep.subr.mxu0 0.0
    %534 = vmatpush1.msra.mxu0 0.0
    %535 = vmatprep.subr.mxu0 0.0
    %536 = vmatpush1.msra.mxu0 0.0
    %537 = vmatprep.subr.mxu0 0.0
    %538 = vmatpush1.msra.mxu0 0.0
    %539 = vmatprep.subr.mxu0 0.0
    %540 = vmatpush1.msra.mxu0 0.0
    %541 = vmatprep.subr.mxu0 0.0
    %542 = vmatpush1.msra.mxu0 0.0
    %543 = vmatprep.subr.mxu0 0.0
    %544 = vmatpush1.msra.mxu0 0.0
    %545 = vmatprep.subr.mxu0 0.0
    %546 = vmatpush1.msra.mxu0 0.0
    %547 = vmatprep.subr.mxu0 0.0
    %548 = vmatpush1.msra.mxu0 0.0
    %549 = vmatprep.subr.mxu0 0.0
    %550 = vmatpush1.msra.mxu0 0.0
    %551 = vmatprep.subr.mxu0 0.0
    %552 = vmatpush1.msra.mxu0 0.0
    %553 = vmatprep.subr.mxu0 0.0
    %554 = vmatpush1.msra.mxu0 0.0
    %555 = vmatprep.subr.mxu0 0.0
    %556 = vmatpush1.msra.mxu0 0.0
    %557 = vmatprep.subr.mxu0 0.0
    %558 = vmatpush1.msra.mxu0 0.0
    %559 = vmatprep.subr.mxu0 0.0
    %560 = vmatpush1.msra.mxu0 0.0
    %561 = vmatprep.subr.mxu0 0.0
    %562 = vmatpush1.msra.mxu0 0.0
    %563 = vmatprep.subr.mxu0 0.0
    %564 = vmatpush1.msra.mxu0 0.0
    %565 = vmatprep.subr.mxu0 0.0
    %566 = vmatpush1.msra.mxu0 0.0
    %567 = vmatprep.subr.mxu0 0.0
    %568 = vmatpush1.msra.mxu0 0.0
    %569 = vmatprep.subr.mxu0 0.0
    %570 = vmatpush1.msra.mxu0 0.0
    %571 = vmatprep.subr.mxu0 0.0
    %572 = vmatpush1.msra.mxu0 0.0
    %573 = vmatprep.mubr.f32.mxu0 0.0
    %574 = vmatmul.mubr.f32.gmra.mrb[0].mxu0 %v504
    %v575 = vpop.f32.mrb[0].mxu0
    %v576 = vadd.f32 0.0, %v575
    %v577 = vpop.f32.mrb[0].mxu0
    %578 = vmatprep.mubr.f32.mxu0 0.0
    %579 = vmatmul.mubr.f32.gmra.mrb[0].mxu0 %v507
    %v580 = vpop.f32.mrb[0].mxu0
    %v581 = vadd.f32 0.0, %v580
    %v582 = vpop.f32.mrb[0].mxu0
    %583 = vdwg.mxu0
    %v584 = vlaneseq
    %v585 = vshrl.u32 %v584, 7
    %v586 = vsub.s32 1, %v585
    %v587 = vrot.slane %v485, %v586
    %v588 = vlaneseq
    %v589 = vshrl.u32 %v588, 7
    %v590 = vsub.s32 1, %v589
    %v591 = vrot.slane %v490, %v590
    %v592 = vmul.f32 %v400, %v587
    %v593 = vmul.f32 %v405, %v591
    %v595 = vsel %vm144, %v592, 0
    %v598 = vsel %vm144, %v593, 0
    %600 = vmatprep.subr.mxu0 0.0
    %601 = vmatpush1.msra.mxu0 %v49
    %602 = vmatprep.subr.mxu0 0.0
    %603 = vmatpush1.msra.mxu0 %v50
    %604 = vmatprep.subr.mxu0 0.0
    %605 = vmatpush1.msra.mxu0 %v51
    %606 = vmatprep.subr.mxu0 0.0
    %607 = vmatpush1.msra.mxu0 %v52
    %608 = vmatprep.subr.mxu0 0.0
    %609 = vmatpush1.msra.mxu0 0.0
    %610 = vmatprep.subr.mxu0 0.0
    %611 = vmatpush1.msra.mxu0 0.0
    %612 = vmatprep.subr.mxu0 0.0
    %613 = vmatpush1.msra.mxu0 0.0
    %614 = vmatprep.subr.mxu0 0.0
    %615 = vmatpush1.msra.mxu0 0.0
    %616 = vmatprep.subr.mxu0 0.0
    %617 = vmatpush1.msra.mxu0 0.0
    %618 = vmatprep.subr.mxu0 0.0
    %619 = vmatpush1.msra.mxu0 0.0
    %620 = vmatprep.subr.mxu0 0.0
    %621 = vmatpush1.msra.mxu0 0.0
    %622 = vmatprep.subr.mxu0 0.0
    %623 = vmatpush1.msra.mxu0 0.0
    %624 = vmatprep.subr.mxu0 0.0
    %625 = vmatpush1.msra.mxu0 0.0
    %626 = vmatprep.subr.mxu0 0.0
    %627 = vmatpush1.msra.mxu0 0.0
    %628 = vmatprep.subr.mxu0 0.0
    %629 = vmatpush1.msra.mxu0 0.0
    %630 = vmatprep.subr.mxu0 0.0
    %631 = vmatpush1.msra.mxu0 0.0
    %632 = vmatprep.subr.mxu0 0.0
    %633 = vmatpush1.msra.mxu0 0.0
    %634 = vmatprep.subr.mxu0 0.0
    %635 = vmatpush1.msra.mxu0 0.0
    %636 = vmatprep.subr.mxu0 0.0
    %637 = vmatpush1.msra.mxu0 0.0
    %638 = vmatprep.subr.mxu0 0.0
    %639 = vmatpush1.msra.mxu0 0.0
    %640 = vmatprep.subr.mxu0 0.0
    %641 = vmatpush1.msra.mxu0 0.0
    %642 = vmatprep.subr.mxu0 0.0
    %643 = vmatpush1.msra.mxu0 0.0
    %644 = vmatprep.subr.mxu0 0.0
    %645 = vmatpush1.msra.mxu0 0.0
    %646 = vmatprep.subr.mxu0 0.0
    %647 = vmatpush1.msra.mxu0 0.0
    %648 = vmatprep.subr.mxu0 0.0
    %649 = vmatpush1.msra.mxu0 0.0
    %650 = vmatprep.subr.mxu0 0.0
    %651 = vmatpush1.msra.mxu0 0.0
    %652 = vmatprep.subr.mxu0 0.0
    %653 = vmatpush1.msra.mxu0 0.0
    %654 = vmatprep.subr.mxu0 0.0
    %655 = vmatpush1.msra.mxu0 0.0
    %656 = vmatprep.subr.mxu0 0.0
    %657 = vmatpush1.msra.mxu0 0.0
    %658 = vmatprep.subr.mxu0 0.0
    %659 = vmatpush1.msra.mxu0 0.0
    %660 = vmatprep.subr.mxu0 0.0
    %661 = vmatpush1.msra.mxu0 0.0
    %662 = vmatprep.subr.mxu0 0.0
    %663 = vmatpush1.msra.mxu0 0.0
    %664 = vmatprep.mubr.f32.mxu0 0.0
    %665 = vmatmul.mubr.f32.gmra.mrb[0].mxu0 %v595
    %v666 = vpop.f32.mrb[0].mxu0
    %v667 = vadd.f32 0.0, %v666
    %v668 = vpop.f32.mrb[0].mxu0
    %669 = vmatprep.mubr.f32.mxu0 0.0
    %670 = vmatmul.mubr.f32.gmra.mrb[0].mxu0 %v598
    %v671 = vpop.f32.mrb[0].mxu0
    %v672 = vadd.f32 0.0, %v671
    %v673 = vpop.f32.mrb[0].mxu0
    %674 = vdwg.mxu0
    %v675 = vlaneseq
    %v676 = vshrl.u32 %v675, 7
    %v677 = vsub.s32 2, %v676
    %v678 = vrot.slane %v485, %v677
    %v679 = vlaneseq
    %v680 = vshrl.u32 %v679, 7
    %v681 = vsub.s32 2, %v680
    %v682 = vrot.slane %v490, %v681
    %v683 = vmul.f32 %v400, %v678
    %v684 = vmul.f32 %v405, %v682
    %v686 = vsel %vm144, %v683, 0
    %v689 = vsel %vm144, %v684, 0
    %691 = vmatprep.subr.mxu0 0.0
    %692 = vmatpush1.msra.mxu0 %v49
    %693 = vmatprep.subr.mxu0 0.0
    %694 = vmatpush1.msra.mxu0 %v50
    %695 = vmatprep.subr.mxu0 0.0
    %696 = vmatpush1.msra.mxu0 %v51
    %697 = vmatprep.subr.mxu0 0.0
    %698 = vmatpush1.msra.mxu0 %v52
    %699 = vmatprep.subr.mxu0 0.0
    %700 = vmatpush1.msra.mxu0 0.0
    %701 = vmatprep.subr.mxu0 0.0
    %702 = vmatpush1.msra.mxu0 0.0
    %703 = vmatprep.subr.mxu0 0.0
    %704 = vmatpush1.msra.mxu0 0.0
    %705 = vmatprep.subr.mxu0 0.0
    %706 = vmatpush1.msra.mxu0 0.0
    %707 = vmatprep.subr.mxu0 0.0
    %708 = vmatpush1.msra.mxu0 0.0
    %709 = vmatprep.subr.mxu0 0.0
    %710 = vmatpush1.msra.mxu0 0.0
    %711 = vmatprep.subr.mxu0 0.0
    %712 = vmatpush1.msra.mxu0 0.0
    %713 = vmatprep.subr.mxu0 0.0
    %714 = vmatpush1.msra.mxu0 0.0
    %715 = vmatprep.subr.mxu0 0.0
    %716 = vmatpush1.msra.mxu0 0.0
    %717 = vmatprep.subr.mxu0 0.0
    %718 = vmatpush1.msra.mxu0 0.0
    %719 = vmatprep.subr.mxu0 0.0
    %720 = vmatpush1.msra.mxu0 0.0
    %721 = vmatprep.subr.mxu0 0.0
    %722 = vmatpush1.msra.mxu0 0.0
    %723 = vmatprep.subr.mxu0 0.0
    %724 = vmatpush1.msra.mxu0 0.0
    %725 = vmatprep.subr.mxu0 0.0
    %726 = vmatpush1.msra.mxu0 0.0
    %727 = vmatprep.subr.mxu0 0.0
    %728 = vmatpush1.msra.mxu0 0.0
    %729 = vmatprep.subr.mxu0 0.0
    %730 = vmatpush1.msra.mxu0 0.0
    %731 = vmatprep.subr.mxu0 0.0
    %732 = vmatpush1.msra.mxu0 0.0
    %733 = vmatprep.subr.mxu0 0.0
    %734 = vmatpush1.msra.mxu0 0.0
    %735 = vmatprep.subr.mxu0 0.0
    %736 = vmatpush1.msra.mxu0 0.0
    %737 = vmatprep.subr.mxu0 0.0
    %738 = vmatpush1.msra.mxu0 0.0
    %739 = vmatprep.subr.mxu0 0.0
    %740 = vmatpush1.msra.mxu0 0.0
    %741 = vmatprep.subr.mxu0 0.0
    %742 = vmatpush1.msra.mxu0 0.0
    %743 = vmatprep.subr.mxu0 0.0
    %744 = vmatpush1.msra.mxu0 0.0
    %745 = vmatprep.subr.mxu0 0.0
    %746 = vmatpush1.msra.mxu0 0.0
    %747 = vmatprep.subr.mxu0 0.0
    %748 = vmatpush1.msra.mxu0 0.0
    %749 = vmatprep.subr.mxu0 0.0
    %750 = vmatpush1.msra.mxu0 0.0
    %751 = vmatprep.subr.mxu0 0.0
    %752 = vmatpush1.msra.mxu0 0.0
    %753 = vmatprep.subr.mxu0 0.0
    %754 = vmatpush1.msra.mxu0 0.0
    %755 = vmatprep.mubr.f32.mxu0 0.0
    %756 = vmatmul.mubr.f32.gmra.mrb[0].mxu0 %v686
    %v757 = vpop.f32.mrb[0].mxu0
    %v758 = vadd.f32 0.0, %v757
    %v759 = vpop.f32.mrb[0].mxu0
    %760 = vmatprep.mubr.f32.mxu0 0.0
    %761 = vmatmul.mubr.f32.gmra.mrb[0].mxu0 %v689
    %v762 = vpop.f32.mrb[0].mxu0
    %v763 = vadd.f32 0.0, %v762
    %v764 = vpop.f32.mrb[0].mxu0
    %765 = vdwg.mxu0
    %v766 = vlaneseq
    %v767 = vshrl.u32 %v766, 7
    %v768 = vsub.s32 3, %v767
    %v769 = vrot.slane %v485, %v768
    %v770 = vlaneseq
    %v771 = vshrl.u32 %v770, 7
    %v772 = vsub.s32 3, %v771
    %v773 = vrot.slane %v490, %v772
    %v774 = vmul.f32 %v400, %v769
    %v775 = vmul.f32 %v405, %v773
    %v777 = vsel %vm144, %v774, 0
    %v780 = vsel %vm144, %v775, 0
    %782 = vmatprep.subr.mxu0 0.0
    %783 = vmatpush1.msra.mxu0 %v49
    %784 = vmatprep.subr.mxu0 0.0
    %785 = vmatpush1.msra.mxu0 %v50
    %786 = vmatprep.subr.mxu0 0.0
    %787 = vmatpush1.msra.mxu0 %v51
    %788 = vmatprep.subr.mxu0 0.0
    %789 = vmatpush1.msra.mxu0 %v52
    %790 = vmatprep.subr.mxu0 0.0
    %791 = vmatpush1.msra.mxu0 0.0
    %792 = vmatprep.subr.mxu0 0.0
    %793 = vmatpush1.msra.mxu0 0.0
    %794 = vmatprep.subr.mxu0 0.0
    %795 = vmatpush1.msra.mxu0 0.0
    %796 = vmatprep.subr.mxu0 0.0
    %797 = vmatpush1.msra.mxu0 0.0
    %798 = vmatprep.subr.mxu0 0.0
    %799 = vmatpush1.msra.mxu0 0.0
    %800 = vmatprep.subr.mxu0 0.0
    %801 = vmatpush1.msra.mxu0 0.0
    %802 = vmatprep.subr.mxu0 0.0
    %803 = vmatpush1.msra.mxu0 0.0
    %804 = vmatprep.subr.mxu0 0.0
    %805 = vmatpush1.msra.mxu0 0.0
    %806 = vmatprep.subr.mxu0 0.0
    %807 = vmatpush1.msra.mxu0 0.0
    %808 = vmatprep.subr.mxu0 0.0
    %809 = vmatpush1.msra.mxu0 0.0
    %810 = vmatprep.subr.mxu0 0.0
    %811 = vmatpush1.msra.mxu0 0.0
    %812 = vmatprep.subr.mxu0 0.0
    %813 = vmatpush1.msra.mxu0 0.0
    %814 = vmatprep.subr.mxu0 0.0
    %815 = vmatpush1.msra.mxu0 0.0
    %816 = vmatprep.subr.mxu0 0.0
    %817 = vmatpush1.msra.mxu0 0.0
    %818 = vmatprep.subr.mxu0 0.0
    %819 = vmatpush1.msra.mxu0 0.0
    %820 = vmatprep.subr.mxu0 0.0
    %821 = vmatpush1.msra.mxu0 0.0
    %822 = vmatprep.subr.mxu0 0.0
    %823 = vmatpush1.msra.mxu0 0.0
    %824 = vmatprep.subr.mxu0 0.0
    %825 = vmatpush1.msra.mxu0 0.0
    %826 = vmatprep.subr.mxu0 0.0
    %827 = vmatpush1.msra.mxu0 0.0
    %828 = vmatprep.subr.mxu0 0.0
    %829 = vmatpush1.msra.mxu0 0.0
    %830 = vmatprep.subr.mxu0 0.0
    %831 = vmatpush1.msra.mxu0 0.0
    %832 = vmatprep.subr.mxu0 0.0
    %833 = vmatpush1.msra.mxu0 0.0
    %834 = vmatprep.subr.mxu0 0.0
    %835 = vmatpush1.msra.mxu0 0.0
    %836 = vmatprep.subr.mxu0 0.0
    %837 = vmatpush1.msra.mxu0 0.0
    %838 = vmatprep.subr.mxu0 0.0
    %839 = vmatpush1.msra.mxu0 0.0
    %840 = vmatprep.subr.mxu0 0.0
    %841 = vmatpush1.msra.mxu0 0.0
    %842 = vmatprep.subr.mxu0 0.0
    %843 = vmatpush1.msra.mxu0 0.0
    %844 = vmatprep.subr.mxu0 0.0
    %845 = vmatpush1.msra.mxu0 0.0
    %846 = vmatprep.mubr.f32.mxu0 0.0
    %847 = vmatmul.mubr.f32.gmra.mrb[0].mxu0 %v777
    %v848 = vpop.f32.mrb[0].mxu0
    %v849 = vadd.f32 0.0, %v848
    %v850 = vpop.f32.mrb[0].mxu0
    %851 = vmatprep.mubr.f32.mxu0 0.0
    %852 = vmatmul.mubr.f32.gmra.mrb[0].mxu0 %v780
    %v853 = vpop.f32.mrb[0].mxu0
    %v854 = vadd.f32 0.0, %v853
    %v855 = vpop.f32.mrb[0].mxu0
    %856 = vdwg.mxu0
    %v857 = vlaneseq
    %v858 = vshrl.u32 %v857, 7
    %v859 = vsub.s32 4, %v858
    %v860 = vrot.slane %v485, %v859
    %v861 = vlaneseq
    %v862 = vshrl.u32 %v861, 7
    %v863 = vsub.s32 4, %v862
    %v864 = vrot.slane %v490, %v863
    %v865 = vmul.f32 %v400, %v860
    %v866 = vmul.f32 %v405, %v864
    %v868 = vsel %vm144, %v865, 0
    %v871 = vsel %vm144, %v866, 0
    %873 = vmatprep.subr.mxu0 0.0
    %874 = vmatpush1.msra.mxu0 %v49
    %875 = vmatprep.subr.mxu0 0.0
    %876 = vmatpush1.msra.mxu0 %v50
    %877 = vmatprep.subr.mxu0 0.0
    %878 = vmatpush1.msra.mxu0 %v51
    %879 = vmatprep.subr.mxu0 0.0
    %880 = vmatpush1.msra.mxu0 %v52
    %881 = vmatprep.subr.mxu0 0.0
    %882 = vmatpush1.msra.mxu0 0.0
    %883 = vmatprep.subr.mxu0 0.0
    %884 = vmatpush1.msra.mxu0 0.0
    %885 = vmatprep.subr.mxu0 0.0
    %886 = vmatpush1.msra.mxu0 0.0
    %887 = vmatprep.subr.mxu0 0.0
    %888 = vmatpush1.msra.mxu0 0.0
    %889 = vmatprep.subr.mxu0 0.0
    %890 = vmatpush1.msra.mxu0 0.0
    %891 = vmatprep.subr.mxu0 0.0
    %892 = vmatpush1.msra.mxu0 0.0
    %893 = vmatprep.subr.mxu0 0.0
    %894 = vmatpush1.msra.mxu0 0.0
    %895 = vmatprep.subr.mxu0 0.0
    %896 = vmatpush1.msra.mxu0 0.0
    %897 = vmatprep.subr.mxu0 0.0
    %898 = vmatpush1.msra.mxu0 0.0
    %899 = vmatprep.subr.mxu0 0.0
    %900 = vmatpush1.msra.mxu0 0.0
    %901 = vmatprep.subr.mxu0 0.0
    %902 = vmatpush1.msra.mxu0 0.0
    %903 = vmatprep.subr.mxu0 0.0
    %904 = vmatpush1.msra.mxu0 0.0
    %905 = vmatprep.subr.mxu0 0.0
    %906 = vmatpush1.msra.mxu0 0.0
    %907 = vmatprep.subr.mxu0 0.0
    %908 = vmatpush1.msra.mxu0 0.0
    %909 = vmatprep.subr.mxu0 0.0
    %910 = vmatpush1.msra.mxu0 0.0
    %911 = vmatprep.subr.mxu0 0.0
    %912 = vmatpush1.msra.mxu0 0.0
    %913 = vmatprep.subr.mxu0 0.0
    %914 = vmatpush1.msra.mxu0 0.0
    %915 = vmatprep.subr.mxu0 0.0
    %916 = vmatpush1.msra.mxu0 0.0
    %917 = vmatprep.subr.mxu0 0.0
    %918 = vmatpush1.msra.mxu0 0.0
    %919 = vmatprep.subr.mxu0 0.0
    %920 = vmatpush1.msra.mxu0 0.0
    %921 = vmatprep.subr.mxu0 0.0
    %922 = vmatpush1.msra.mxu0 0.0
    %923 = vmatprep.subr.mxu0 0.0
    %924 = vmatpush1.msra.mxu0 0.0
    %925 = vmatprep.subr.mxu0 0.0
    %926 = vmatpush1.msra.mxu0 0.0
    %927 = vmatprep.subr.mxu0 0.0
    %928 = vmatpush1.msra.mxu0 0.0
    %929 = vmatprep.subr.mxu0 0.0
    %930 = vmatpush1.msra.mxu0 0.0
    %931 = vmatprep.subr.mxu0 0.0
    %932 = vmatpush1.msra.mxu0 0.0
    %933 = vmatprep.subr.mxu0 0.0
    %934 = vmatpush1.msra.mxu0 0.0
    %935 = vmatprep.subr.mxu0 0.0
    %936 = vmatpush1.msra.mxu0 0.0
    %937 = vmatprep.mubr.f32.mxu0 0.0
    %938 = vmatmul.mubr.f32.gmra.mrb[0].mxu0 %v868
    %v939 = vpop.f32.mrb[0].mxu0
    %v940 = vadd.f32 0.0, %v939
    %v941 = vpop.f32.mrb[0].mxu0
    %942 = vmatprep.mubr.f32.mxu0 0.0
    %943 = vmatmul.mubr.f32.gmra.mrb[0].mxu0 %v871
    %v944 = vpop.f32.mrb[0].mxu0
    %v945 = vadd.f32 0.0, %v944
    %v946 = vpop.f32.mrb[0].mxu0
    %947 = vdwg.mxu0
    %v948 = vlaneseq
    %v949 = vshrl.u32 %v948, 7
    %v950 = vsub.s32 5, %v949
    %v951 = vrot.slane %v485, %v950
    %v952 = vlaneseq
    %v953 = vshrl.u32 %v952, 7
    %v954 = vsub.s32 5, %v953
    %v955 = vrot.slane %v490, %v954
    %v956 = vmul.f32 %v400, %v951
    %v957 = vmul.f32 %v405, %v955
    %v959 = vsel %vm144, %v956, 0
    %v962 = vsel %vm144, %v957, 0
    %964 = vmatprep.subr.mxu0 0.0
    %965 = vmatpush1.msra.mxu0 %v49
    %966 = vmatprep.subr.mxu0 0.0
    %967 = vmatpush1.msra.mxu0 %v50
    %968 = vmatprep.subr.mxu0 0.0
    %969 = vmatpush1.msra.mxu0 %v51
    %970 = vmatprep.subr.mxu0 0.0
    %971 = vmatpush1.msra.mxu0 %v52
    %972 = vmatprep.subr.mxu0 0.0
    %973 = vmatpush1.msra.mxu0 0.0
    %974 = vmatprep.subr.mxu0 0.0
    %975 = vmatpush1.msra.mxu0 0.0
    %976 = vmatprep.subr.mxu0 0.0
    %977 = vmatpush1.msra.mxu0 0.0
    %978 = vmatprep.subr.mxu0 0.0
    %979 = vmatpush1.msra.mxu0 0.0
    %980 = vmatprep.subr.mxu0 0.0
    %981 = vmatpush1.msra.mxu0 0.0
    %982 = vmatprep.subr.mxu0 0.0
    %983 = vmatpush1.msra.mxu0 0.0
    %984 = vmatprep.subr.mxu0 0.0
    %985 = vmatpush1.msra.mxu0 0.0
    %986 = vmatprep.subr.mxu0 0.0
    %987 = vmatpush1.msra.mxu0 0.0
    %988 = vmatprep.subr.mxu0 0.0
    %989 = vmatpush1.msra.mxu0 0.0
    %990 = vmatprep.subr.mxu0 0.0
    %991 = vmatpush1.msra.mxu0 0.0
    %992 = vmatprep.subr.mxu0 0.0
    %993 = vmatpush1.msra.mxu0 0.0
    %994 = vmatprep.subr.mxu0 0.0
    %995 = vmatpush1.msra.mxu0 0.0
    %996 = vmatprep.subr.mxu0 0.0
    %997 = vmatpush1.msra.mxu0 0.0
    %998 = vmatprep.subr.mxu0 0.0
    %999 = vmatpush1.msra.mxu0 0.0
    %1000 = vmatprep.subr.mxu0 0.0
    %1001 = vmatpush1.msra.mxu0 0.0
    %1002 = vmatprep.subr.mxu0 0.0
    %1003 = vmatpush1.msra.mxu0 0.0
    %1004 = vmatprep.subr.mxu0 0.0
    %1005 = vmatpush1.msra.mxu0 0.0
    %1006 = vmatprep.subr.mxu0 0.0
    %1007 = vmatpush1.msra.mxu0 0.0
    %1008 = vmatprep.subr.mxu0 0.0
    %1009 = vmatpush1.msra.mxu0 0.0
    %1010 = vmatprep.subr.mxu0 0.0
    %1011 = vmatpush1.msra.mxu0 0.0
    %1012 = vmatprep.subr.mxu0 0.0
    %1013 = vmatpush1.msra.mxu0 0.0
    %1014 = vmatprep.subr.mxu0 0.0
    %1015 = vmatpush1.msra.mxu0 0.0
    %1016 = vmatprep.subr.mxu0 0.0
    %1017 = vmatpush1.msra.mxu0 0.0
    %1018 = vmatprep.subr.mxu0 0.0
    %1019 = vmatpush1.msra.mxu0 0.0
    %1020 = vmatprep.subr.mxu0 0.0
    %1021 = vmatpush1.msra.mxu0 0.0
    %1022 = vmatprep.subr.mxu0 0.0
    %1023 = vmatpush1.msra.mxu0 0.0
    %1024 = vmatprep.subr.mxu0 0.0
    %1025 = vmatpush1.msra.mxu0 0.0
    %1026 = vmatprep.subr.mxu0 0.0
    %1027 = vmatpush1.msra.mxu0 0.0
    %1028 = vmatprep.mubr.f32.mxu0 0.0
    %1029 = vmatmul.mubr.f32.gmra.mrb[0].mxu0 %v959
    %v1030 = vpop.f32.mrb[0].mxu0
    %v1031 = vadd.f32 0.0, %v1030
    %v1032 = vpop.f32.mrb[0].mxu0
    %1033 = vmatprep.mubr.f32.mxu0 0.0
    %1034 = vmatmul.mubr.f32.gmra.mrb[0].mxu0 %v962
    %v1035 = vpop.f32.mrb[0].mxu0
    %v1036 = vadd.f32 0.0, %v1035
    %v1037 = vpop.f32.mrb[0].mxu0
    %1038 = vdwg.mxu0
    %v1039 = vlaneseq
    %v1040 = vshrl.u32 %v1039, 7
    %v1041 = vsub.s32 6, %v1040
    %v1042 = vrot.slane %v485, %v1041
    %v1043 = vlaneseq
    %v1044 = vshrl.u32 %v1043, 7
    %v1045 = vsub.s32 6, %v1044
    %v1046 = vrot.slane %v490, %v1045
    %v1047 = vmul.f32 %v400, %v1042
    %v1048 = vmul.f32 %v405, %v1046
    %v1050 = vsel %vm144, %v1047, 0
    %v1053 = vsel %vm144, %v1048, 0
    %1055 = vmatprep.subr.mxu0 0.0
    %1056 = vmatpush1.msra.mxu0 %v49
    %1057 = vmatprep.subr.mxu0 0.0
    %1058 = vmatpush1.msra.mxu0 %v50
    %1059 = vmatprep.subr.mxu0 0.0
    %1060 = vmatpush1.msra.mxu0 %v51
    %1061 = vmatprep.subr.mxu0 0.0
    %1062 = vmatpush1.msra.mxu0 %v52
    %1063 = vmatprep.subr.mxu0 0.0
    %1064 = vmatpush1.msra.mxu0 0.0
    %1065 = vmatprep.subr.mxu0 0.0
    %1066 = vmatpush1.msra.mxu0 0.0
    %1067 = vmatprep.subr.mxu0 0.0
    %1068 = vmatpush1.msra.mxu0 0.0
    %1069 = vmatprep.subr.mxu0 0.0
    %1070 = vmatpush1.msra.mxu0 0.0
    %1071 = vmatprep.subr.mxu0 0.0
    %1072 = vmatpush1.msra.mxu0 0.0
    %1073 = vmatprep.subr.mxu0 0.0
    %1074 = vmatpush1.msra.mxu0 0.0
    %1075 = vmatprep.subr.mxu0 0.0
    %1076 = vmatpush1.msra.mxu0 0.0
    %1077 = vmatprep.subr.mxu0 0.0
    %1078 = vmatpush1.msra.mxu0 0.0
    %1079 = vmatprep.subr.mxu0 0.0
    %1080 = vmatpush1.msra.mxu0 0.0
    %1081 = vmatprep.subr.mxu0 0.0
    %1082 = vmatpush1.msra.mxu0 0.0
    %1083 = vmatprep.subr.mxu0 0.0
    %1084 = vmatpush1.msra.mxu0 0.0
    %1085 = vmatprep.subr.mxu0 0.0
    %1086 = vmatpush1.msra.mxu0 0.0
    %1087 = vmatprep.subr.mxu0 0.0
    %1088 = vmatpush1.msra.mxu0 0.0
    %1089 = vmatprep.subr.mxu0 0.0
    %1090 = vmatpush1.msra.mxu0 0.0
    %1091 = vmatprep.subr.mxu0 0.0
    %1092 = vmatpush1.msra.mxu0 0.0
    %1093 = vmatprep.subr.mxu0 0.0
    %1094 = vmatpush1.msra.mxu0 0.0
    %1095 = vmatprep.subr.mxu0 0.0
    %1096 = vmatpush1.msra.mxu0 0.0
    %1097 = vmatprep.subr.mxu0 0.0
    %1098 = vmatpush1.msra.mxu0 0.0
    %1099 = vmatprep.subr.mxu0 0.0
    %1100 = vmatpush1.msra.mxu0 0.0
    %1101 = vmatprep.subr.mxu0 0.0
    %1102 = vmatpush1.msra.mxu0 0.0
    %1103 = vmatprep.subr.mxu0 0.0
    %1104 = vmatpush1.msra.mxu0 0.0
    %1105 = vmatprep.subr.mxu0 0.0
    %1106 = vmatpush1.msra.mxu0 0.0
    %1107 = vmatprep.subr.mxu0 0.0
    %1108 = vmatpush1.msra.mxu0 0.0
    %1109 = vmatprep.subr.mxu0 0.0
    %1110 = vmatpush1.msra.mxu0 0.0
    %1111 = vmatprep.subr.mxu0 0.0
    %1112 = vmatpush1.msra.mxu0 0.0
    %1113 = vmatprep.subr.mxu0 0.0
    %1114 = vmatpush1.msra.mxu0 0.0
    %1115 = vmatprep.subr.mxu0 0.0
    %1116 = vmatpush1.msra.mxu0 0.0
    %1117 = vmatprep.subr.mxu0 0.0
    %1118 = vmatpush1.msra.mxu0 0.0
    %1119 = vmatprep.mubr.f32.mxu0 0.0
    %1120 = vmatmul.mubr.f32.gmra.mrb[0].mxu0 %v1050
    %v1121 = vpop.f32.mrb[0].mxu0
    %v1122 = vadd.f32 0.0, %v1121
    %v1123 = vpop.f32.mrb[0].mxu0
    %1124 = vmatprep.mubr.f32.mxu0 0.0
    %1125 = vmatmul.mubr.f32.gmra.mrb[0].mxu0 %v1053
    %v1126 = vpop.f32.mrb[0].mxu0
    %v1127 = vadd.f32 0.0, %v1126
    %v1128 = vpop.f32.mrb[0].mxu0
    %1129 = vdwg.mxu0
    %v1130 = vlaneseq
    %v1131 = vshrl.u32 %v1130, 7
    %v1132 = vsub.s32 7, %v1131
    %v1133 = vrot.slane %v485, %v1132
    %v1134 = vlaneseq
    %v1135 = vshrl.u32 %v1134, 7
    %v1136 = vsub.s32 7, %v1135
    %v1137 = vrot.slane %v490, %v1136
    %v1138 = vmul.f32 %v400, %v1133
    %v1139 = vmul.f32 %v405, %v1137
    %v1141 = vsel %vm144, %v1138, 0
    %v1144 = vsel %vm144, %v1139, 0
    %1146 = vmatprep.subr.mxu0 0.0
    %1147 = vmatpush1.msra.mxu0 %v49
    %1148 = vmatprep.subr.mxu0 0.0
    %1149 = vmatpush1.msra.mxu0 %v50
    %1150 = vmatprep.subr.mxu0 0.0
    %1151 = vmatpush1.msra.mxu0 %v51
    %1152 = vmatprep.subr.mxu0 0.0
    %1153 = vmatpush1.msra.mxu0 %v52
    %1154 = vmatprep.subr.mxu0 0.0
    %1155 = vmatpush1.msra.mxu0 0.0
    %1156 = vmatprep.subr.mxu0 0.0
    %1157 = vmatpush1.msra.mxu0 0.0
    %1158 = vmatprep.subr.mxu0 0.0
    %1159 = vmatpush1.msra.mxu0 0.0
    %1160 = vmatprep.subr.mxu0 0.0
    %1161 = vmatpush1.msra.mxu0 0.0
    %1162 = vmatprep.subr.mxu0 0.0
    %1163 = vmatpush1.msra.mxu0 0.0
    %1164 = vmatprep.subr.mxu0 0.0
    %1165 = vmatpush1.msra.mxu0 0.0
    %1166 = vmatprep.subr.mxu0 0.0
    %1167 = vmatpush1.msra.mxu0 0.0
    %1168 = vmatprep.subr.mxu0 0.0
    %1169 = vmatpush1.msra.mxu0 0.0
    %1170 = vmatprep.subr.mxu0 0.0
    %1171 = vmatpush1.msra.mxu0 0.0
    %1172 = vmatprep.subr.mxu0 0.0
    %1173 = vmatpush1.msra.mxu0 0.0
    %1174 = vmatprep.subr.mxu0 0.0
    %1175 = vmatpush1.msra.mxu0 0.0
    %1176 = vmatprep.subr.mxu0 0.0
    %1177 = vmatpush1.msra.mxu0 0.0
    %1178 = vmatprep.subr.mxu0 0.0
    %1179 = vmatpush1.msra.mxu0 0.0
    %1180 = vmatprep.subr.mxu0 0.0
    %1181 = vmatpush1.msra.mxu0 0.0
    %1182 = vmatprep.subr.mxu0 0.0
    %1183 = vmatpush1.msra.mxu0 0.0
    %1184 = vmatprep.subr.mxu0 0.0
    %1185 = vmatpush1.msra.mxu0 0.0
    %1186 = vmatprep.subr.mxu0 0.0
    %1187 = vmatpush1.msra.mxu0 0.0
    %1188 = vmatprep.subr.mxu0 0.0
    %1189 = vmatpush1.msra.mxu0 0.0
    %1190 = vmatprep.subr.mxu0 0.0
    %1191 = vmatpush1.msra.mxu0 0.0
    %1192 = vmatprep.subr.mxu0 0.0
    %1193 = vmatpush1.msra.mxu0 0.0
    %1194 = vmatprep.subr.mxu0 0.0
    %1195 = vmatpush1.msra.mxu0 0.0
    %1196 = vmatprep.subr.mxu0 0.0
    %1197 = vmatpush1.msra.mxu0 0.0
    %1198 = vmatprep.subr.mxu0 0.0
    %1199 = vmatpush1.msra.mxu0 0.0
    %1200 = vmatprep.subr.mxu0 0.0
    %1201 = vmatpush1.msra.mxu0 0.0
    %1202 = vmatprep.subr.mxu0 0.0
    %1203 = vmatpush1.msra.mxu0 0.0
    %1204 = vmatprep.subr.mxu0 0.0
    %1205 = vmatpush1.msra.mxu0 0.0
    %1206 = vmatprep.subr.mxu0 0.0
    %1207 = vmatpush1.msra.mxu0 0.0
    %1208 = vmatprep.subr.mxu0 0.0
    %1209 = vmatpush1.msra.mxu0 0.0
    %1210 = vmatprep.mubr.f32.mxu0 0.0
    %1211 = vmatmul.mubr.f32.gmra.mrb[0].mxu0 %v1141
    %v1212 = vpop.f32.mrb[0].mxu0
    %v1213 = vadd.f32 0.0, %v1212
    %v1214 = vpop.f32.mrb[0].mxu0
    %1215 = vmatprep.mubr.f32.mxu0 0.0
    %1216 = vmatmul.mubr.f32.gmra.mrb[0].mxu0 %v1144
    %v1217 = vpop.f32.mrb[0].mxu0
    %v1218 = vadd.f32 0.0, %v1217
    %v1219 = vpop.f32.mrb[0].mxu0
    %1220 = vdwg.mxu0
    %v1221 = vmax.f32 %v576, %v667
    %v1222 = vmax.f32 %v581, %v672
    %v1223 = vmax.f32 %v1221, %v758
    %v1224 = vmax.f32 %v1222, %v763
    %v1225 = vmax.f32 %v1223, %v849
    %v1226 = vmax.f32 %v1224, %v854
    %v1227 = vmax.f32 %v1225, %v940
    %v1228 = vmax.f32 %v1226, %v945
    %v1229 = vmax.f32 %v1227, %v1031
    %v1230 = vmax.f32 %v1228, %v1036
    %v1231 = vmax.f32 %v1229, %v1122
    %v1232 = vmax.f32 %v1230, %v1127
    %v1233 = vmax.f32 %v1231, %v1213
    %v1234 = vmax.f32 %v1232, %v1218
    %v1235 = vsub.f32 %v576, %v1233
    %v1236 = vsub.f32 %v581, %v1234
    %v1237 = vmul.f32 %v1235, 1.442695
    %v1238 = vpow.pop %v1237
    %v1239 = vmul.f32 %v1236, 1.442695
    %v1240 = vpow.pop %v1239
    %v1241 = vsub.f32 %v667, %v1233
    %v1242 = vsub.f32 %v672, %v1234
    %v1243 = vmul.f32 %v1241, 1.442695
    %v1244 = vpow.pop %v1243
    %v1245 = vmul.f32 %v1242, 1.442695
    %v1246 = vpow.pop %v1245
    %v1247 = vsub.f32 %v758, %v1233
    %v1248 = vsub.f32 %v763, %v1234
    %v1249 = vmul.f32 %v1247, 1.442695
    %v1250 = vpow.pop %v1249
    %v1251 = vmul.f32 %v1248, 1.442695
    %v1252 = vpow.pop %v1251
    %v1253 = vsub.f32 %v849, %v1233
    %v1254 = vsub.f32 %v854, %v1234
    %v1255 = vmul.f32 %v1253, 1.442695
    %v1256 = vpow.pop %v1255
    %v1257 = vmul.f32 %v1254, 1.442695
    %v1258 = vpow.pop %v1257
    %v1259 = vsub.f32 %v940, %v1233
    %v1260 = vsub.f32 %v945, %v1234
    %v1261 = vmul.f32 %v1259, 1.442695
    %v1262 = vpow.pop %v1261
    %v1263 = vmul.f32 %v1260, 1.442695
    %v1264 = vpow.pop %v1263
    %v1265 = vsub.f32 %v1031, %v1233
    %v1266 = vsub.f32 %v1036, %v1234
    %v1267 = vmul.f32 %v1265, 1.442695
    %v1268 = vpow.pop %v1267
    %v1269 = vmul.f32 %v1266, 1.442695
    %v1270 = vpow.pop %v1269
    %v1271 = vsub.f32 %v1122, %v1233
    %v1272 = vsub.f32 %v1127, %v1234
    %v1273 = vmul.f32 %v1271, 1.442695
    %v1274 = vpow.pop %v1273
    %v1275 = vmul.f32 %v1272, 1.442695
    %v1276 = vpow.pop %v1275
    %v1277 = vsub.f32 %v1213, %v1233
    %v1278 = vsub.f32 %v1218, %v1234
    %v1279 = vmul.f32 %v1277, 1.442695
    %v1280 = vpow.pop %v1279
    %v1281 = vmul.f32 %v1278, 1.442695
    %v1282 = vpow.pop %v1281
    %v1283 = vadd.f32 %v1238, %v1244
    %v1284 = vadd.f32 %v1240, %v1246
    %v1285 = vadd.f32 %v1283, %v1250
    %v1286 = vadd.f32 %v1284, %v1252
    %v1287 = vadd.f32 %v1285, %v1256
    %v1288 = vadd.f32 %v1286, %v1258
    %v1289 = vadd.f32 %v1287, %v1262
    %v1290 = vadd.f32 %v1288, %v1264
    %v1291 = vadd.f32 %v1289, %v1268
    %v1292 = vadd.f32 %v1290, %v1270
    %v1293 = vadd.f32 %v1291, %v1274
    %v1294 = vadd.f32 %v1292, %v1276
    %v1295 = vadd.f32 %v1293, %v1280
    %v1296 = vadd.f32 %v1294, %v1282
    %v1297 = vrcp.pop %v1295
    %v1298 = vrcp.pop %v1296
    %v1299 = vmul.f32 %v1238, %v1297
    %v1300 = vmul.f32 %v1240, %v1298
    %vm1301 = vcmask 64512
    %v1303 = vsel %vm1301, %v1299, 0
    %v1306 = vsel %vm1301, %v1300, 0
    %1308 = vmatprep.subr.mxu0 0.0
    %1309 = vmatpush1.msra.mxu0 %v53
    %1310 = vmatprep.subr.mxu0 0.0
    %1311 = vmatpush1.msra.mxu0 0.0
    %1312 = vmatprep.subr.mxu0 0.0
    %1313 = vmatpush1.msra.mxu0 0.0
    %1314 = vmatprep.subr.mxu0 0.0
    %1315 = vmatpush1.msra.mxu0 0.0
    %1316 = vmatprep.subr.mxu0 0.0
    %1317 = vmatpush1.msra.mxu0 0.0
    %1318 = vmatprep.subr.mxu0 0.0
    %1319 = vmatpush1.msra.mxu0 0.0
    %1320 = vmatprep.subr.mxu0 0.0
    %1321 = vmatpush1.msra.mxu0 0.0
    %1322 = vmatprep.subr.mxu0 0.0
    %1323 = vmatpush1.msra.mxu0 0.0
    %1324 = vmatprep.subr.mxu0 0.0
    %1325 = vmatpush1.msra.mxu0 0.0
    %1326 = vmatprep.subr.mxu0 0.0
    %1327 = vmatpush1.msra.mxu0 0.0
    %1328 = vmatprep.subr.mxu0 0.0
    %1329 = vmatpush1.msra.mxu0 0.0
    %1330 = vmatprep.subr.mxu0 0.0
    %1331 = vmatpush1.msra.mxu0 0.0
    %1332 = vmatprep.subr.mxu0 0.0
    %1333 = vmatpush1.msra.mxu0 0.0
    %1334 = vmatprep.subr.mxu0 0.0
    %1335 = vmatpush1.msra.mxu0 0.0
    %1336 = vmatprep.subr.mxu0 0.0
    %1337 = vmatpush1.msra.mxu0 0.0
    %1338 = vmatprep.subr.mxu0 0.0
    %1339 = vmatpush1.msra.mxu0 0.0
    %1340 = vmatprep.subr.mxu0 0.0
    %1341 = vmatpush1.msra.mxu0 0.0
    %1342 = vmatprep.subr.mxu0 0.0
    %1343 = vmatpush1.msra.mxu0 0.0
    %1344 = vmatprep.subr.mxu0 0.0
    %1345 = vmatpush1.msra.mxu0 0.0
    %1346 = vmatprep.subr.mxu0 0.0
    %1347 = vmatpush1.msra.mxu0 0.0
    %1348 = vmatprep.subr.mxu0 0.0
    %1349 = vmatpush1.msra.mxu0 0.0
    %1350 = vmatprep.subr.mxu0 0.0
    %1351 = vmatpush1.msra.mxu0 0.0
    %1352 = vmatprep.subr.mxu0 0.0
    %1353 = vmatpush1.msra.mxu0 0.0
    %1354 = vmatprep.subr.mxu0 0.0
    %1355 = vmatpush1.msra.mxu0 0.0
    %1356 = vmatprep.subr.mxu0 0.0
    %1357 = vmatpush1.msra.mxu0 0.0
    %1358 = vmatprep.subr.mxu0 0.0
    %1359 = vmatpush1.msra.mxu0 0.0
    %1360 = vmatprep.subr.mxu0 0.0
    %1361 = vmatpush1.msra.mxu0 0.0
    %1362 = vmatprep.subr.mxu0 0.0
    %1363 = vmatpush1.msra.mxu0 0.0
    %1364 = vmatprep.subr.mxu0 0.0
    %1365 = vmatpush1.msra.mxu0 0.0
    %1366 = vmatprep.subr.mxu0 0.0
    %1367 = vmatpush1.msra.mxu0 0.0
    %1368 = vmatprep.subr.mxu0 0.0
    %1369 = vmatpush1.msra.mxu0 0.0
    %1370 = vmatprep.subr.mxu0 0.0
    %1371 = vmatpush1.msra.mxu0 0.0
    %1372 = vmatprep.mubr.f32.mxu0 0.0
    %1373 = vmatmul.mubr.f32.gmra.mrb[0].mxu0 %v1303
    %v1374 = vpop.f32.mrb[0].mxu0
    %v1375 = vadd.f32 0.0, %v1374
    %v1376 = vpop.f32.mrb[0].mxu0
    %1377 = vmatprep.mubr.f32.mxu0 0.0
    %1378 = vmatmul.mubr.f32.gmra.mrb[0].mxu0 %v1306
    %v1379 = vpop.f32.mrb[0].mxu0
    %v1380 = vadd.f32 0.0, %v1379
    %v1381 = vpop.f32.mrb[0].mxu0
    %1382 = vdwg.mxu0
    %1385 = vrot.lane.b32.xlu0 %v496, 96
    %v1386 = vpop.permute.xlu0 %1385
    %1387 = vrot.lane.b32.xlu0 %v500, 96
    %v1388 = vpop.permute.xlu0 %1387
    %v1391 = vmul.f32 %v1375, %v1386
    %v1392 = vmul.f32 %v1380, %v1388
    %v1393 = vmul.f32 %v1244, %v1297
    %v1394 = vmul.f32 %v1246, %v1298
    %v1396 = vsel %vm1301, %v1393, 0
    %v1399 = vsel %vm1301, %v1394, 0
    %1401 = vmatprep.subr.mxu0 0.0
    %1402 = vmatpush1.msra.mxu0 %v53
    %1403 = vmatprep.subr.mxu0 0.0
    %1404 = vmatpush1.msra.mxu0 0.0
    %1405 = vmatprep.subr.mxu0 0.0
    %1406 = vmatpush1.msra.mxu0 0.0
    %1407 = vmatprep.subr.mxu0 0.0
    %1408 = vmatpush1.msra.mxu0 0.0
    %1409 = vmatprep.subr.mxu0 0.0
    %1410 = vmatpush1.msra.mxu0 0.0
    %1411 = vmatprep.subr.mxu0 0.0
    %1412 = vmatpush1.msra.mxu0 0.0
    %1413 = vmatprep.subr.mxu0 0.0
    %1414 = vmatpush1.msra.mxu0 0.0
    %1415 = vmatprep.subr.mxu0 0.0
    %1416 = vmatpush1.msra.mxu0 0.0
    %1417 = vmatprep.subr.mxu0 0.0
    %1418 = vmatpush1.msra.mxu0 0.0
    %1419 = vmatprep.subr.mxu0 0.0
    %1420 = vmatpush1.msra.mxu0 0.0
    %1421 = vmatprep.subr.mxu0 0.0
    %1422 = vmatpush1.msra.mxu0 0.0
    %1423 = vmatprep.subr.mxu0 0.0
    %1424 = vmatpush1.msra.mxu0 0.0
    %1425 = vmatprep.subr.mxu0 0.0
    %1426 = vmatpush1.msra.mxu0 0.0
    %1427 = vmatprep.subr.mxu0 0.0
    %1428 = vmatpush1.msra.mxu0 0.0
    %1429 = vmatprep.subr.mxu0 0.0
    %1430 = vmatpush1.msra.mxu0 0.0
    %1431 = vmatprep.subr.mxu0 0.0
    %1432 = vmatpush1.msra.mxu0 0.0
    %1433 = vmatprep.subr.mxu0 0.0
    %1434 = vmatpush1.msra.mxu0 0.0
    %1435 = vmatprep.subr.mxu0 0.0
    %1436 = vmatpush1.msra.mxu0 0.0
    %1437 = vmatprep.subr.mxu0 0.0
    %1438 = vmatpush1.msra.mxu0 0.0
    %1439 = vmatprep.subr.mxu0 0.0
    %1440 = vmatpush1.msra.mxu0 0.0
    %1441 = vmatprep.subr.mxu0 0.0
    %1442 = vmatpush1.msra.mxu0 0.0
    %1443 = vmatprep.subr.mxu0 0.0
    %1444 = vmatpush1.msra.mxu0 0.0
    %1445 = vmatprep.subr.mxu0 0.0
    %1446 = vmatpush1.msra.mxu0 0.0
    %1447 = vmatprep.subr.mxu0 0.0
    %1448 = vmatpush1.msra.mxu0 0.0
    %1449 = vmatprep.subr.mxu0 0.0
    %1450 = vmatpush1.msra.mxu0 0.0
    %1451 = vmatprep.subr.mxu0 0.0
    %1452 = vmatpush1.msra.mxu0 0.0
    %1453 = vmatprep.subr.mxu0 0.0
    %1454 = vmatpush1.msra.mxu0 0.0
    %1455 = vmatprep.subr.mxu0 0.0
    %1456 = vmatpush1.msra.mxu0 0.0
    %1457 = vmatprep.subr.mxu0 0.0
    %1458 = vmatpush1.msra.mxu0 0.0
    %1459 = vmatprep.subr.mxu0 0.0
    %1460 = vmatpush1.msra.mxu0 0.0
    %1461 = vmatprep.subr.mxu0 0.0
    %1462 = vmatpush1.msra.mxu0 0.0
    %1463 = vmatprep.subr.mxu0 0.0
    %1464 = vmatpush1.msra.mxu0 0.0
    %1465 = vmatprep.mubr.f32.mxu0 0.0
    %1466 = vmatmul.mubr.f32.gmra.mrb[0].mxu0 %v1396
    %v1467 = vpop.f32.mrb[0].mxu0
    %v1468 = vadd.f32 0.0, %v1467
    %v1469 = vpop.f32.mrb[0].mxu0
    %1470 = vmatprep.mubr.f32.mxu0 0.0
    %1471 = vmatmul.mubr.f32.gmra.mrb[0].mxu0 %v1399
    %v1472 = vpop.f32.mrb[0].mxu0
    %v1473 = vadd.f32 0.0, %v1472
    %v1474 = vpop.f32.mrb[0].mxu0
    %1475 = vdwg.mxu0
    %1478 = vrot.lane.b32.xlu0 %v587, 96
    %v1479 = vpop.permute.xlu0 %1478
    %1480 = vrot.lane.b32.xlu0 %v591, 96
    %v1481 = vpop.permute.xlu0 %1480
    %v1484 = vmul.f32 %v1468, %v1479
    %v1485 = vmul.f32 %v1473, %v1481
    %v1486 = vadd.f32 %v1391, %v1484
    %v1487 = vadd.f32 %v1392, %v1485
    %v1488 = vmul.f32 %v1250, %v1297
    %v1489 = vmul.f32 %v1252, %v1298
    %v1491 = vsel %vm1301, %v1488, 0
    %v1494 = vsel %vm1301, %v1489, 0
    %1496 = vmatprep.subr.mxu0 0.0
    %1497 = vmatpush1.msra.mxu0 %v53
    %1498 = vmatprep.subr.mxu0 0.0
    %1499 = vmatpush1.msra.mxu0 0.0
    %1500 = vmatprep.subr.mxu0 0.0
    %1501 = vmatpush1.msra.mxu0 0.0
    %1502 = vmatprep.subr.mxu0 0.0
    %1503 = vmatpush1.msra.mxu0 0.0
    %1504 = vmatprep.subr.mxu0 0.0
    %1505 = vmatpush1.msra.mxu0 0.0
    %1506 = vmatprep.subr.mxu0 0.0
    %1507 = vmatpush1.msra.mxu0 0.0
    %1508 = vmatprep.subr.mxu0 0.0
    %1509 = vmatpush1.msra.mxu0 0.0
    %1510 = vmatprep.subr.mxu0 0.0
    %1511 = vmatpush1.msra.mxu0 0.0
    %1512 = vmatprep.subr.mxu0 0.0
    %1513 = vmatpush1.msra.mxu0 0.0
    %1514 = vmatprep.subr.mxu0 0.0
    %1515 = vmatpush1.msra.mxu0 0.0
    %1516 = vmatprep.subr.mxu0 0.0
    %1517 = vmatpush1.msra.mxu0 0.0
    %1518 = vmatprep.subr.mxu0 0.0
    %1519 = vmatpush1.msra.mxu0 0.0
    %1520 = vmatprep.subr.mxu0 0.0
    %1521 = vmatpush1.msra.mxu0 0.0
    %1522 = vmatprep.subr.mxu0 0.0
    %1523 = vmatpush1.msra.mxu0 0.0
    %1524 = vmatprep.subr.mxu0 0.0
    %1525 = vmatpush1.msra.mxu0 0.0
    %1526 = vmatprep.subr.mxu0 0.0
    %1527 = vmatpush1.msra.mxu0 0.0
    %1528 = vmatprep.subr.mxu0 0.0
    %1529 = vmatpush1.msra.mxu0 0.0
    %1530 = vmatprep.subr.mxu0 0.0
    %1531 = vmatpush1.msra.mxu0 0.0
    %1532 = vmatprep.subr.mxu0 0.0
    %1533 = vmatpush1.msra.mxu0 0.0
    %1534 = vmatprep.subr.mxu0 0.0
    %1535 = vmatpush1.msra.mxu0 0.0
    %1536 = vmatprep.subr.mxu0 0.0
    %1537 = vmatpush1.msra.mxu0 0.0
    %1538 = vmatprep.subr.mxu0 0.0
    %1539 = vmatpush1.msra.mxu0 0.0
    %1540 = vmatprep.subr.mxu0 0.0
    %1541 = vmatpush1.msra.mxu0 0.0
    %1542 = vmatprep.subr.mxu0 0.0
    %1543 = vmatpush1.msra.mxu0 0.0
    %1544 = vmatprep.subr.mxu0 0.0
    %1545 = vmatpush1.msra.mxu0 0.0
    %1546 = vmatprep.subr.mxu0 0.0
    %1547 = vmatpush1.msra.mxu0 0.0
    %1548 = vmatprep.subr.mxu0 0.0
    %1549 = vmatpush1.msra.mxu0 0.0
    %1550 = vmatprep.subr.mxu0 0.0
    %1551 = vmatpush1.msra.mxu0 0.0
    %1552 = vmatprep.subr.mxu0 0.0
    %1553 = vmatpush1.msra.mxu0 0.0
    %1554 = vmatprep.subr.mxu0 0.0
    %1555 = vmatpush1.msra.mxu0 0.0
    %1556 = vmatprep.subr.mxu0 0.0
    %1557 = vmatpush1.msra.mxu0 0.0
    %1558 = vmatprep.subr.mxu0 0.0
    %1559 = vmatpush1.msra.mxu0 0.0
    %1560 = vmatprep.mubr.f32.mxu0 0.0
    %1561 = vmatmul.mubr.f32.gmra.mrb[0].mxu0 %v1491
    %v1562 = vpop.f32.mrb[0].mxu0
    %v1563 = vadd.f32 0.0, %v1562
    %v1564 = vpop.f32.mrb[0].mxu0
    %1565 = vmatprep.mubr.f32.mxu0 0.0
    %1566 = vmatmul.mubr.f32.gmra.mrb[0].mxu0 %v1494
    %v1567 = vpop.f32.mrb[0].mxu0
    %v1568 = vadd.f32 0.0, %v1567
    %v1569 = vpop.f32.mrb[0].mxu0
    %1570 = vdwg.mxu0
    %1573 = vrot.lane.b32.xlu0 %v678, 96
    %v1574 = vpop.permute.xlu0 %1573
    %1575 = vrot.lane.b32.xlu0 %v682, 96
    %v1576 = vpop.permute.xlu0 %1575
    %v1579 = vmul.f32 %v1563, %v1574
    %v1580 = vmul.f32 %v1568, %v1576
    %v1581 = vadd.f32 %v1486, %v1579
    %v1582 = vadd.f32 %v1487, %v1580
    %v1583 = vmul.f32 %v1256, %v1297
    %v1584 = vmul.f32 %v1258, %v1298
    %v1586 = vsel %vm1301, %v1583, 0
    %v1589 = vsel %vm1301, %v1584, 0
    %1591 = vmatprep.subr.mxu0 0.0
    %1592 = vmatpush1.msra.mxu0 %v53
    %1593 = vmatprep.subr.mxu0 0.0
    %1594 = vmatpush1.msra.mxu0 0.0
    %1595 = vmatprep.subr.mxu0 0.0
    %1596 = vmatpush1.msra.mxu0 0.0
    %1597 = vmatprep.subr.mxu0 0.0
    %1598 = vmatpush1.msra.mxu0 0.0
    %1599 = vmatprep.subr.mxu0 0.0
    %1600 = vmatpush1.msra.mxu0 0.0
    %1601 = vmatprep.subr.mxu0 0.0
    %1602 = vmatpush1.msra.mxu0 0.0
    %1603 = vmatprep.subr.mxu0 0.0
    %1604 = vmatpush1.msra.mxu0 0.0
    %1605 = vmatprep.subr.mxu0 0.0
    %1606 = vmatpush1.msra.mxu0 0.0
    %1607 = vmatprep.subr.mxu0 0.0
    %1608 = vmatpush1.msra.mxu0 0.0
    %1609 = vmatprep.subr.mxu0 0.0
    %1610 = vmatpush1.msra.mxu0 0.0
    %1611 = vmatprep.subr.mxu0 0.0
    %1612 = vmatpush1.msra.mxu0 0.0
    %1613 = vmatprep.subr.mxu0 0.0
    %1614 = vmatpush1.msra.mxu0 0.0
    %1615 = vmatprep.subr.mxu0 0.0
    %1616 = vmatpush1.msra.mxu0 0.0
    %1617 = vmatprep.subr.mxu0 0.0
    %1618 = vmatpush1.msra.mxu0 0.0
    %1619 = vmatprep.subr.mxu0 0.0
    %1620 = vmatpush1.msra.mxu0 0.0
    %1621 = vmatprep.subr.mxu0 0.0
    %1622 = vmatpush1.msra.mxu0 0.0
    %1623 = vmatprep.subr.mxu0 0.0
    %1624 = vmatpush1.msra.mxu0 0.0
    %1625 = vmatprep.subr.mxu0 0.0
    %1626 = vmatpush1.msra.mxu0 0.0
    %1627 = vmatprep.subr.mxu0 0.0
    %1628 = vmatpush1.msra.mxu0 0.0
    %1629 = vmatprep.subr.mxu0 0.0
    %1630 = vmatpush1.msra.mxu0 0.0
    %1631 = vmatprep.subr.mxu0 0.0
    %1632 = vmatpush1.msra.mxu0 0.0
    %1633 = vmatprep.subr.mxu0 0.0
    %1634 = vmatpush1.msra.mxu0 0.0
    %1635 = vmatprep.subr.mxu0 0.0
    %1636 = vmatpush1.msra.mxu0 0.0
    %1637 = vmatprep.subr.mxu0 0.0
    %1638 = vmatpush1.msra.mxu0 0.0
    %1639 = vmatprep.subr.mxu0 0.0
    %1640 = vmatpush1.msra.mxu0 0.0
    %1641 = vmatprep.subr.mxu0 0.0
    %1642 = vmatpush1.msra.mxu0 0.0
    %1643 = vmatprep.subr.mxu0 0.0
    %1644 = vmatpush1.msra.mxu0 0.0
    %1645 = vmatprep.subr.mxu0 0.0
    %1646 = vmatpush1.msra.mxu0 0.0
    %1647 = vmatprep.subr.mxu0 0.0
    %1648 = vmatpush1.msra.mxu0 0.0
    %1649 = vmatprep.subr.mxu0 0.0
    %1650 = vmatpush1.msra.mxu0 0.0
    %1651 = vmatprep.subr.mxu0 0.0
    %1652 = vmatpush1.msra.mxu0 0.0
    %1653 = vmatprep.subr.mxu0 0.0
    %1654 = vmatpush1.msra.mxu0 0.0
    %1655 = vmatprep.mubr.f32.mxu0 0.0
    %1656 = vmatmul.mubr.f32.gmra.mrb[0].mxu0 %v1586
    %v1657 = vpop.f32.mrb[0].mxu0
    %v1658 = vadd.f32 0.0, %v1657
    %v1659 = vpop.f32.mrb[0].mxu0
    %1660 = vmatprep.mubr.f32.mxu0 0.0
    %1661 = vmatmul.mubr.f32.gmra.mrb[0].mxu0 %v1589
    %v1662 = vpop.f32.mrb[0].mxu0
    %v1663 = vadd.f32 0.0, %v1662
    %v1664 = vpop.f32.mrb[0].mxu0
    %1665 = vdwg.mxu0
    %1668 = vrot.lane.b32.xlu0 %v769, 96
    %v1669 = vpop.permute.xlu0 %1668
    %1670 = vrot.lane.b32.xlu0 %v773, 96
    %v1671 = vpop.permute.xlu0 %1670
    %v1674 = vmul.f32 %v1658, %v1669
    %v1675 = vmul.f32 %v1663, %v1671
    %v1676 = vadd.f32 %v1581, %v1674
    %v1677 = vadd.f32 %v1582, %v1675
    %v1678 = vmul.f32 %v1262, %v1297
    %v1679 = vmul.f32 %v1264, %v1298
    %v1681 = vsel %vm1301, %v1678, 0
    %v1684 = vsel %vm1301, %v1679, 0
    %1686 = vmatprep.subr.mxu0 0.0
    %1687 = vmatpush1.msra.mxu0 %v53
    %1688 = vmatprep.subr.mxu0 0.0
    %1689 = vmatpush1.msra.mxu0 0.0
    %1690 = vmatprep.subr.mxu0 0.0
    %1691 = vmatpush1.msra.mxu0 0.0
    %1692 = vmatprep.subr.mxu0 0.0
    %1693 = vmatpush1.msra.mxu0 0.0
    %1694 = vmatprep.subr.mxu0 0.0
    %1695 = vmatpush1.msra.mxu0 0.0
    %1696 = vmatprep.subr.mxu0 0.0
    %1697 = vmatpush1.msra.mxu0 0.0
    %1698 = vmatprep.subr.mxu0 0.0
    %1699 = vmatpush1.msra.mxu0 0.0
    %1700 = vmatprep.subr.mxu0 0.0
    %1701 = vmatpush1.msra.mxu0 0.0
    %1702 = vmatprep.subr.mxu0 0.0
    %1703 = vmatpush1.msra.mxu0 0.0
    %1704 = vmatprep.subr.mxu0 0.0
    %1705 = vmatpush1.msra.mxu0 0.0
    %1706 = vmatprep.subr.mxu0 0.0
    %1707 = vmatpush1.msra.mxu0 0.0
    %1708 = vmatprep.subr.mxu0 0.0
    %1709 = vmatpush1.msra.mxu0 0.0
    %1710 = vmatprep.subr.mxu0 0.0
    %1711 = vmatpush1.msra.mxu0 0.0
    %1712 = vmatprep.subr.mxu0 0.0
    %1713 = vmatpush1.msra.mxu0 0.0
    %1714 = vmatprep.subr.mxu0 0.0
    %1715 = vmatpush1.msra.mxu0 0.0
    %1716 = vmatprep.subr.mxu0 0.0
    %1717 = vmatpush1.msra.mxu0 0.0
    %1718 = vmatprep.subr.mxu0 0.0
    %1719 = vmatpush1.msra.mxu0 0.0
    %1720 = vmatprep.subr.mxu0 0.0
    %1721 = vmatpush1.msra.mxu0 0.0
    %1722 = vmatprep.subr.mxu0 0.0
    %1723 = vmatpush1.msra.mxu0 0.0
    %1724 = vmatprep.subr.mxu0 0.0
    %1725 = vmatpush1.msra.mxu0 0.0
    %1726 = vmatprep.subr.mxu0 0.0
    %1727 = vmatpush1.msra.mxu0 0.0
    %1728 = vmatprep.subr.mxu0 0.0
    %1729 = vmatpush1.msra.mxu0 0.0
    %1730 = vmatprep.subr.mxu0 0.0
    %1731 = vmatpush1.msra.mxu0 0.0
    %1732 = vmatprep.subr.mxu0 0.0
    %1733 = vmatpush1.msra.mxu0 0.0
    %1734 = vmatprep.subr.mxu0 0.0
    %1735 = vmatpush1.msra.mxu0 0.0
    %1736 = vmatprep.subr.mxu0 0.0
    %1737 = vmatpush1.msra.mxu0 0.0
    %1738 = vmatprep.subr.mxu0 0.0
    %1739 = vmatpush1.msra.mxu0 0.0
    %1740 = vmatprep.subr.mxu0 0.0
    %1741 = vmatpush1.msra.mxu0 0.0
    %1742 = vmatprep.subr.mxu0 0.0
    %1743 = vmatpush1.msra.mxu0 0.0
    %1744 = vmatprep.subr.mxu0 0.0
    %1745 = vmatpush1.msra.mxu0 0.0
    %1746 = vmatprep.subr.mxu0 0.0
    %1747 = vmatpush1.msra.mxu0 0.0
    %1748 = vmatprep.subr.mxu0 0.0
    %1749 = vmatpush1.msra.mxu0 0.0
    %1750 = vmatprep.mubr.f32.mxu0 0.0
    %1751 = vmatmul.mubr.f32.gmra.mrb[0].mxu0 %v1681
    %v1752 = vpop.f32.mrb[0].mxu0
    %v1753 = vadd.f32 0.0, %v1752
    %v1754 = vpop.f32.mrb[0].mxu0
    %1755 = vmatprep.mubr.f32.mxu0 0.0
    %1756 = vmatmul.mubr.f32.gmra.mrb[0].mxu0 %v1684
    %v1757 = vpop.f32.mrb[0].mxu0
    %v1758 = vadd.f32 0.0, %v1757
    %v1759 = vpop.f32.mrb[0].mxu0
    %1760 = vdwg.mxu0
    %1763 = vrot.lane.b32.xlu0 %v860, 96
    %v1764 = vpop.permute.xlu0 %1763
    %1765 = vrot.lane.b32.xlu0 %v864, 96
    %v1766 = vpop.permute.xlu0 %1765
    %v1769 = vmul.f32 %v1753, %v1764
    %v1770 = vmul.f32 %v1758, %v1766
    %v1771 = vadd.f32 %v1676, %v1769
    %v1772 = vadd.f32 %v1677, %v1770
    %v1773 = vmul.f32 %v1268, %v1297
    %v1774 = vmul.f32 %v1270, %v1298
    %v1776 = vsel %vm1301, %v1773, 0
    %v1779 = vsel %vm1301, %v1774, 0
    %1781 = vmatprep.subr.mxu0 0.0
    %1782 = vmatpush1.msra.mxu0 %v53
    %1783 = vmatprep.subr.mxu0 0.0
    %1784 = vmatpush1.msra.mxu0 0.0
    %1785 = vmatprep.subr.mxu0 0.0
    %1786 = vmatpush1.msra.mxu0 0.0
    %1787 = vmatprep.subr.mxu0 0.0
    %1788 = vmatpush1.msra.mxu0 0.0
    %1789 = vmatprep.subr.mxu0 0.0
    %1790 = vmatpush1.msra.mxu0 0.0
    %1791 = vmatprep.subr.mxu0 0.0
    %1792 = vmatpush1.msra.mxu0 0.0
    %1793 = vmatprep.subr.mxu0 0.0
    %1794 = vmatpush1.msra.mxu0 0.0
    %1795 = vmatprep.subr.mxu0 0.0
    %1796 = vmatpush1.msra.mxu0 0.0
    %1797 = vmatprep.subr.mxu0 0.0
    %1798 = vmatpush1.msra.mxu0 0.0
    %1799 = vmatprep.subr.mxu0 0.0
    %1800 = vmatpush1.msra.mxu0 0.0
    %1801 = vmatprep.subr.mxu0 0.0
    %1802 = vmatpush1.msra.mxu0 0.0
    %1803 = vmatprep.subr.mxu0 0.0
    %1804 = vmatpush1.msra.mxu0 0.0
    %1805 = vmatprep.subr.mxu0 0.0
    %1806 = vmatpush1.msra.mxu0 0.0
    %1807 = vmatprep.subr.mxu0 0.0
    %1808 = vmatpush1.msra.mxu0 0.0
    %1809 = vmatprep.subr.mxu0 0.0
    %1810 = vmatpush1.msra.mxu0 0.0
    %1811 = vmatprep.subr.mxu0 0.0
    %1812 = vmatpush1.msra.mxu0 0.0
    %1813 = vmatprep.subr.mxu0 0.0
    %1814 = vmatpush1.msra.mxu0 0.0
    %1815 = vmatprep.subr.mxu0 0.0
    %1816 = vmatpush1.msra.mxu0 0.0
    %1817 = vmatprep.subr.mxu0 0.0
    %1818 = vmatpush1.msra.mxu0 0.0
    %1819 = vmatprep.subr.mxu0 0.0
    %1820 = vmatpush1.msra.mxu0 0.0
    %1821 = vmatprep.subr.mxu0 0.0
    %1822 = vmatpush1.msra.mxu0 0.0
    %1823 = vmatprep.subr.mxu0 0.0
    %1824 = vmatpush1.msra.mxu0 0.0
    %1825 = vmatprep.subr.mxu0 0.0
    %1826 = vmatpush1.msra.mxu0 0.0
    %1827 = vmatprep.subr.mxu0 0.0
    %1828 = vmatpush1.msra.mxu0 0.0
    %1829 = vmatprep.subr.mxu0 0.0
    %1830 = vmatpush1.msra.mxu0 0.0
    %1831 = vmatprep.subr.mxu0 0.0
    %1832 = vmatpush1.msra.mxu0 0.0
    %1833 = vmatprep.subr.mxu0 0.0
    %1834 = vmatpush1.msra.mxu0 0.0
    %1835 = vmatprep.subr.mxu0 0.0
    %1836 = vmatpush1.msra.mxu0 0.0
    %1837 = vmatprep.subr.mxu0 0.0
    %1838 = vmatpush1.msra.mxu0 0.0
    %1839 = vmatprep.subr.mxu0 0.0
    %1840 = vmatpush1.msra.mxu0 0.0
    %1841 = vmatprep.subr.mxu0 0.0
    %1842 = vmatpush1.msra.mxu0 0.0
    %1843 = vmatprep.subr.mxu0 0.0
    %1844 = vmatpush1.msra.mxu0 0.0
    %1845 = vmatprep.mubr.f32.mxu0 0.0
    %1846 = vmatmul.mubr.f32.gmra.mrb[0].mxu0 %v1776
    %v1847 = vpop.f32.mrb[0].mxu0
    %v1848 = vadd.f32 0.0, %v1847
    %v1849 = vpop.f32.mrb[0].mxu0
    %1850 = vmatprep.mubr.f32.mxu0 0.0
    %1851 = vmatmul.mubr.f32.gmra.mrb[0].mxu0 %v1779
    %v1852 = vpop.f32.mrb[0].mxu0
    %v1853 = vadd.f32 0.0, %v1852
    %v1854 = vpop.f32.mrb[0].mxu0
    %1855 = vdwg.mxu0
    %1858 = vrot.lane.b32.xlu0 %v951, 96
    %v1859 = vpop.permute.xlu0 %1858
    %1860 = vrot.lane.b32.xlu0 %v955, 96
    %v1861 = vpop.permute.xlu0 %1860
    %v1864 = vmul.f32 %v1848, %v1859
    %v1865 = vmul.f32 %v1853, %v1861
    %v1866 = vadd.f32 %v1771, %v1864
    %v1867 = vadd.f32 %v1772, %v1865
    %v1868 = vmul.f32 %v1274, %v1297
    %v1869 = vmul.f32 %v1276, %v1298
    %v1871 = vsel %vm1301, %v1868, 0
    %v1874 = vsel %vm1301, %v1869, 0
    %1876 = vmatprep.subr.mxu0 0.0
    %1877 = vmatpush1.msra.mxu0 %v53
    %1878 = vmatprep.subr.mxu0 0.0
    %1879 = vmatpush1.msra.mxu0 0.0
    %1880 = vmatprep.subr.mxu0 0.0
    %1881 = vmatpush1.msra.mxu0 0.0
    %1882 = vmatprep.subr.mxu0 0.0
    %1883 = vmatpush1.msra.mxu0 0.0
    %1884 = vmatprep.subr.mxu0 0.0
    %1885 = vmatpush1.msra.mxu0 0.0
    %1886 = vmatprep.subr.mxu0 0.0
    %1887 = vmatpush1.msra.mxu0 0.0
    %1888 = vmatprep.subr.mxu0 0.0
    %1889 = vmatpush1.msra.mxu0 0.0
    %1890 = vmatprep.subr.mxu0 0.0
    %1891 = vmatpush1.msra.mxu0 0.0
    %1892 = vmatprep.subr.mxu0 0.0
    %1893 = vmatpush1.msra.mxu0 0.0
    %1894 = vmatprep.subr.mxu0 0.0
    %1895 = vmatpush1.msra.mxu0 0.0
    %1896 = vmatprep.subr.mxu0 0.0
    %1897 = vmatpush1.msra.mxu0 0.0
    %1898 = vmatprep.subr.mxu0 0.0
    %1899 = vmatpush1.msra.mxu0 0.0
    %1900 = vmatprep.subr.mxu0 0.0
    %1901 = vmatpush1.msra.mxu0 0.0
    %1902 = vmatprep.subr.mxu0 0.0
    %1903 = vmatpush1.msra.mxu0 0.0
    %1904 = vmatprep.subr.mxu0 0.0
    %1905 = vmatpush1.msra.mxu0 0.0
    %1906 = vmatprep.subr.mxu0 0.0
    %1907 = vmatpush1.msra.mxu0 0.0
    %1908 = vmatprep.subr.mxu0 0.0
    %1909 = vmatpush1.msra.mxu0 0.0
    %1910 = vmatprep.subr.mxu0 0.0
    %1911 = vmatpush1.msra.mxu0 0.0
    %1912 = vmatprep.subr.mxu0 0.0
    %1913 = vmatpush1.msra.mxu0 0.0
    %1914 = vmatprep.subr.mxu0 0.0
    %1915 = vmatpush1.msra.mxu0 0.0
    %1916 = vmatprep.subr.mxu0 0.0
    %1917 = vmatpush1.msra.mxu0 0.0
    %1918 = vmatprep.subr.mxu0 0.0
    %1919 = vmatpush1.msra.mxu0 0.0
    %1920 = vmatprep.subr.mxu0 0.0
    %1921 = vmatpush1.msra.mxu0 0.0
    %1922 = vmatprep.subr.mxu0 0.0
    %1923 = vmatpush1.msra.mxu0 0.0
    %1924 = vmatprep.subr.mxu0 0.0
    %1925 = vmatpush1.msra.mxu0 0.0
    %1926 = vmatprep.subr.mxu0 0.0
    %1927 = vmatpush1.msra.mxu0 0.0
    %1928 = vmatprep.subr.mxu0 0.0
    %1929 = vmatpush1.msra.mxu0 0.0
    %1930 = vmatprep.subr.mxu0 0.0
    %1931 = vmatpush1.msra.mxu0 0.0
    %1932 = vmatprep.subr.mxu0 0.0
    %1933 = vmatpush1.msra.mxu0 0.0
    %1934 = vmatprep.subr.mxu0 0.0
    %1935 = vmatpush1.msra.mxu0 0.0
    %1936 = vmatprep.subr.mxu0 0.0
    %1937 = vmatpush1.msra.mxu0 0.0
    %1938 = vmatprep.subr.mxu0 0.0
    %1939 = vmatpush1.msra.mxu0 0.0
    %1940 = vmatprep.mubr.f32.mxu0 0.0
    %1941 = vmatmul.mubr.f32.gmra.mrb[0].mxu0 %v1871
    %v1942 = vpop.f32.mrb[0].mxu0
    %v1943 = vadd.f32 0.0, %v1942
    %v1944 = vpop.f32.mrb[0].mxu0
    %1945 = vmatprep.mubr.f32.mxu0 0.0
    %1946 = vmatmul.mubr.f32.gmra.mrb[0].mxu0 %v1874
    %v1947 = vpop.f32.mrb[0].mxu0
    %v1948 = vadd.f32 0.0, %v1947
    %v1949 = vpop.f32.mrb[0].mxu0
    %1950 = vdwg.mxu0
    %1953 = vrot.lane.b32.xlu0 %v1042, 96
    %v1954 = vpop.permute.xlu0 %1953
    %1955 = vrot.lane.b32.xlu0 %v1046, 96
    %v1956 = vpop.permute.xlu0 %1955
    %v1959 = vmul.f32 %v1943, %v1954
    %v1960 = vmul.f32 %v1948, %v1956
    %v1961 = vadd.f32 %v1866, %v1959
    %v1962 = vadd.f32 %v1867, %v1960
    %v1963 = vmul.f32 %v1280, %v1297
    %v1964 = vmul.f32 %v1282, %v1298
    %v1966 = vsel %vm1301, %v1963, 0
    %v1969 = vsel %vm1301, %v1964, 0
    %1971 = vmatprep.subr.mxu0 0.0
    %1972 = vmatpush1.msra.mxu0 %v53
    %1973 = vmatprep.subr.mxu0 0.0
    %1974 = vmatpush1.msra.mxu0 0.0
    %1975 = vmatprep.subr.mxu0 0.0
    %1976 = vmatpush1.msra.mxu0 0.0
    %1977 = vmatprep.subr.mxu0 0.0
    %1978 = vmatpush1.msra.mxu0 0.0
    %1979 = vmatprep.subr.mxu0 0.0
    %1980 = vmatpush1.msra.mxu0 0.0
    %1981 = vmatprep.subr.mxu0 0.0
    %1982 = vmatpush1.msra.mxu0 0.0
    %1983 = vmatprep.subr.mxu0 0.0
    %1984 = vmatpush1.msra.mxu0 0.0
    %1985 = vmatprep.subr.mxu0 0.0
    %1986 = vmatpush1.msra.mxu0 0.0
    %1987 = vmatprep.subr.mxu0 0.0
    %1988 = vmatpush1.msra.mxu0 0.0
    %1989 = vmatprep.subr.mxu0 0.0
    %1990 = vmatpush1.msra.mxu0 0.0
    %1991 = vmatprep.subr.mxu0 0.0
    %1992 = vmatpush1.msra.mxu0 0.0
    %1993 = vmatprep.subr.mxu0 0.0
    %1994 = vmatpush1.msra.mxu0 0.0
    %1995 = vmatprep.subr.mxu0 0.0
    %1996 = vmatpush1.msra.mxu0 0.0
    %1997 = vmatprep.subr.mxu0 0.0
    %1998 = vmatpush1.msra.mxu0 0.0
    %1999 = vmatprep.subr.mxu0 0.0
    %2000 = vmatpush1.msra.mxu0 0.0
    %2001 = vmatprep.subr.mxu0 0.0
    %2002 = vmatpush1.msra.mxu0 0.0
    %2003 = vmatprep.subr.mxu0 0.0
    %2004 = vmatpush1.msra.mxu0 0.0
    %2005 = vmatprep.subr.mxu0 0.0
    %2006 = vmatpush1.msra.mxu0 0.0
    %2007 = vmatprep.subr.mxu0 0.0
    %2008 = vmatpush1.msra.mxu0 0.0
    %2009 = vmatprep.subr.mxu0 0.0
    %2010 = vmatpush1.msra.mxu0 0.0
    %2011 = vmatprep.subr.mxu0 0.0
    %2012 = vmatpush1.msra.mxu0 0.0
    %2013 = vmatprep.subr.mxu0 0.0
    %2014 = vmatpush1.msra.mxu0 0.0
    %2015 = vmatprep.subr.mxu0 0.0
    %2016 = vmatpush1.msra.mxu0 0.0
    %2017 = vmatprep.subr.mxu0 0.0
    %2018 = vmatpush1.msra.mxu0 0.0
    %2019 = vmatprep.subr.mxu0 0.0
    %2020 = vmatpush1.msra.mxu0 0.0
    %2021 = vmatprep.subr.mxu0 0.0
    %2022 = vmatpush1.msra.mxu0 0.0
    %2023 = vmatprep.subr.mxu0 0.0
    %2024 = vmatpush1.msra.mxu0 0.0
    %2025 = vmatprep.subr.mxu0 0.0
    %2026 = vmatpush1.msra.mxu0 0.0
    %2027 = vmatprep.subr.mxu0 0.0
    %2028 = vmatpush1.msra.mxu0 0.0
    %2029 = vmatprep.subr.mxu0 0.0
    %2030 = vmatpush1.msra.mxu0 0.0
    %2031 = vmatprep.subr.mxu0 0.0
    %2032 = vmatpush1.msra.mxu0 0.0
    %2033 = vmatprep.subr.mxu0 0.0
    %2034 = vmatpush1.msra.mxu0 0.0
    %2035 = vmatprep.mubr.f32.mxu0 0.0
    %2036 = vmatmul.mubr.f32.gmra.mrb[0].mxu0 %v1966
    %v2037 = vpop.f32.mrb[0].mxu0
    %v2038 = vadd.f32 0.0, %v2037
    %v2039 = vpop.f32.mrb[0].mxu0
    %2040 = vmatprep.mubr.f32.mxu0 0.0
    %2041 = vmatmul.mubr.f32.gmra.mrb[0].mxu0 %v1969
    %v2042 = vpop.f32.mrb[0].mxu0
    %v2043 = vadd.f32 0.0, %v2042
    %v2044 = vpop.f32.mrb[0].mxu0
    %2045 = vdwg.mxu0
    %2048 = vrot.lane.b32.xlu0 %v1133, 96
    %v2049 = vpop.permute.xlu0 %2048
    %2050 = vrot.lane.b32.xlu0 %v1137, 96
    %v2051 = vpop.permute.xlu0 %2050
    %v2054 = vmul.f32 %v2038, %v2049
    %v2055 = vmul.f32 %v2043, %v2051
    %v2056 = vadd.f32 %v1961, %v2054
    %v2057 = vadd.f32 %v1962, %v2055
    %v2058 = vlaneseq
    %v2059 = vshrl.u32 %v2058, 7
    %v2060 = vsub.s32 5, %v2059
    %v2061 = vrot.slane %v42, %v2060
    %v2063 = vsel %vm144, %v2056, 0
    %v2066 = vsel %vm144, %v2057, 0
    %2068 = vmatprep.subr.mxu0 0.0
    %2069 = vmatpush1.msra.mxu0 %v34
    %2070 = vmatprep.subr.mxu0 0.0
    %2071 = vmatpush1.msra.mxu0 %v35
    %2072 = vmatprep.subr.mxu0 0.0
    %2073 = vmatpush1.msra.mxu0 %v36
    %2074 = vmatprep.subr.mxu0 0.0
    %2075 = vmatpush1.msra.mxu0 %v37
    %2076 = vmatprep.subr.mxu0 0.0
    %2077 = vmatpush1.msra.mxu0 0.0
    %2078 = vmatprep.subr.mxu0 0.0
    %2079 = vmatpush1.msra.mxu0 0.0
    %2080 = vmatprep.subr.mxu0 0.0
    %2081 = vmatpush1.msra.mxu0 0.0
    %2082 = vmatprep.subr.mxu0 0.0
    %2083 = vmatpush1.msra.mxu0 0.0
    %2084 = vmatprep.subr.mxu0 0.0
    %2085 = vmatpush1.msra.mxu0 0.0
    %2086 = vmatprep.subr.mxu0 0.0
    %2087 = vmatpush1.msra.mxu0 0.0
    %2088 = vmatprep.subr.mxu0 0.0
    %2089 = vmatpush1.msra.mxu0 0.0
    %2090 = vmatprep.subr.mxu0 0.0
    %2091 = vmatpush1.msra.mxu0 0.0
    %2092 = vmatprep.subr.mxu0 0.0
    %2093 = vmatpush1.msra.mxu0 0.0
    %2094 = vmatprep.subr.mxu0 0.0
    %2095 = vmatpush1.msra.mxu0 0.0
    %2096 = vmatprep.subr.mxu0 0.0
    %2097 = vmatpush1.msra.mxu0 0.0
    %2098 = vmatprep.subr.mxu0 0.0
    %2099 = vmatpush1.msra.mxu0 0.0
    %2100 = vmatprep.subr.mxu0 0.0
    %2101 = vmatpush1.msra.mxu0 0.0
    %2102 = vmatprep.subr.mxu0 0.0
    %2103 = vmatpush1.msra.mxu0 0.0
    %2104 = vmatprep.subr.mxu0 0.0
    %2105 = vmatpush1.msra.mxu0 0.0
    %2106 = vmatprep.subr.mxu0 0.0
    %2107 = vmatpush1.msra.mxu0 0.0
    %2108 = vmatprep.subr.mxu0 0.0
    %2109 = vmatpush1.msra.mxu0 0.0
    %2110 = vmatprep.subr.mxu0 0.0
    %2111 = vmatpush1.msra.mxu0 0.0
    %2112 = vmatprep.subr.mxu0 0.0
    %2113 = vmatpush1.msra.mxu0 0.0
    %2114 = vmatprep.subr.mxu0 0.0
    %2115 = vmatpush1.msra.mxu0 0.0
    %2116 = vmatprep.subr.mxu0 0.0
    %2117 = vmatpush1.msra.mxu0 0.0
    %2118 = vmatprep.subr.mxu0 0.0
    %2119 = vmatpush1.msra.mxu0 0.0
    %2120 = vmatprep.subr.mxu0 0.0
    %2121 = vmatpush1.msra.mxu0 0.0
    %2122 = vmatprep.subr.mxu0 0.0
    %2123 = vmatpush1.msra.mxu0 0.0
    %2124 = vmatprep.subr.mxu0 0.0
    %2125 = vmatpush1.msra.mxu0 0.0
    %2126 = vmatprep.subr.mxu0 0.0
    %2127 = vmatpush1.msra.mxu0 0.0
    %2128 = vmatprep.subr.mxu0 0.0
    %2129 = vmatpush1.msra.mxu0 0.0
    %2130 = vmatprep.subr.mxu0 0.0
    %2131 = vmatpush1.msra.mxu0 0.0
    %2132 = vmatprep.mubr.f32.mxu0 0.0
    %2133 = vmatmul.mubr.f32.gmra.mrb[0].mxu0 %v2063
    %v2134 = vpop.f32.mrb[0].mxu0
    %v2135 = vadd.f32 %v2061, %v2134
    %v2136 = vpop.f32.mrb[0].mxu0
    %2137 = vmatprep.mubr.f32.mxu0 0.0
    %2138 = vmatmul.mubr.f32.gmra.mrb[0].mxu0 %v2066
    %v2139 = vpop.f32.mrb[0].mxu0
    %v2140 = vadd.f32 %v2061, %v2139
    %v2141 = vpop.f32.mrb[0].mxu0
    %2142 = vdwg.mxu0
    %v2143 = vlaneseq
    %v2144 = vshrl.u32 %v2143, 7
    %v2145 = vsub.s32 6, %v2144
    %v2146 = vrot.slane %v42, %v2145
    %v2148 = vsel %vm144, %v2135, 0
    %v2151 = vsel %vm144, %v2140, 0
    %2153 = vmatprep.subr.mxu0 0.0
    %2154 = vmatpush1.msra.mxu0 %v38
    %2155 = vmatprep.subr.mxu0 0.0
    %2156 = vmatpush1.msra.mxu0 %v39
    %2157 = vmatprep.subr.mxu0 0.0
    %2158 = vmatpush1.msra.mxu0 %v40
    %2159 = vmatprep.subr.mxu0 0.0
    %2160 = vmatpush1.msra.mxu0 %v41
    %2161 = vmatprep.subr.mxu0 0.0
    %2162 = vmatpush1.msra.mxu0 0.0
    %2163 = vmatprep.subr.mxu0 0.0
    %2164 = vmatpush1.msra.mxu0 0.0
    %2165 = vmatprep.subr.mxu0 0.0
    %2166 = vmatpush1.msra.mxu0 0.0
    %2167 = vmatprep.subr.mxu0 0.0
    %2168 = vmatpush1.msra.mxu0 0.0
    %2169 = vmatprep.subr.mxu0 0.0
    %2170 = vmatpush1.msra.mxu0 0.0
    %2171 = vmatprep.subr.mxu0 0.0
    %2172 = vmatpush1.msra.mxu0 0.0
    %2173 = vmatprep.subr.mxu0 0.0
    %2174 = vmatpush1.msra.mxu0 0.0
    %2175 = vmatprep.subr.mxu0 0.0
    %2176 = vmatpush1.msra.mxu0 0.0
    %2177 = vmatprep.subr.mxu0 0.0
    %2178 = vmatpush1.msra.mxu0 0.0
    %2179 = vmatprep.subr.mxu0 0.0
    %2180 = vmatpush1.msra.mxu0 0.0
    %2181 = vmatprep.subr.mxu0 0.0
    %2182 = vmatpush1.msra.mxu0 0.0
    %2183 = vmatprep.subr.mxu0 0.0
    %2184 = vmatpush1.msra.mxu0 0.0
    %2185 = vmatprep.subr.mxu0 0.0
    %2186 = vmatpush1.msra.mxu0 0.0
    %2187 = vmatprep.subr.mxu0 0.0
    %2188 = vmatpush1.msra.mxu0 0.0
    %2189 = vmatprep.subr.mxu0 0.0
    %2190 = vmatpush1.msra.mxu0 0.0
    %2191 = vmatprep.subr.mxu0 0.0
    %2192 = vmatpush1.msra.mxu0 0.0
    %2193 = vmatprep.subr.mxu0 0.0
    %2194 = vmatpush1.msra.mxu0 0.0
    %2195 = vmatprep.subr.mxu0 0.0
    %2196 = vmatpush1.msra.mxu0 0.0
    %2197 = vmatprep.subr.mxu0 0.0
    %2198 = vmatpush1.msra.mxu0 0.0
    %2199 = vmatprep.subr.mxu0 0.0
    %2200 = vmatpush1.msra.mxu0 0.0
    %2201 = vmatprep.subr.mxu0 0.0
    %2202 = vmatpush1.msra.mxu0 0.0
    %2203 = vmatprep.subr.mxu0 0.0
    %2204 = vmatpush1.msra.mxu0 0.0
    %2205 = vmatprep.subr.mxu0 0.0
    %2206 = vmatpush1.msra.mxu0 0.0
    %2207 = vmatprep.subr.mxu0 0.0
    %2208 = vmatpush1.msra.mxu0 0.0
    %2209 = vmatprep.subr.mxu0 0.0
    %2210 = vmatpush1.msra.mxu0 0.0
    %2211 = vmatprep.subr.mxu0 0.0
    %2212 = vmatpush1.msra.mxu0 0.0
    %2213 = vmatprep.subr.mxu0 0.0
    %2214 = vmatpush1.msra.mxu0 0.0
    %2215 = vmatprep.subr.mxu0 0.0
    %2216 = vmatpush1.msra.mxu0 0.0
    %2217 = vmatprep.mubr.f32.mxu0 0.0
    %2218 = vmatmul.mubr.f32.gmra.mrb[0].mxu0 %v2148
    %v2219 = vpop.f32.mrb[0].mxu0
    %v2220 = vadd.f32 %v2146, %v2219
    %v2221 = vpop.f32.mrb[0].mxu0
    %2222 = vmatprep.mubr.f32.mxu0 0.0
    %2223 = vmatmul.mubr.f32.gmra.mrb[0].mxu0 %v2151
    %v2224 = vpop.f32.mrb[0].mxu0
    %v2225 = vadd.f32 %v2146, %v2224
    %v2226 = vpop.f32.mrb[0].mxu0
    %2227 = vdwg.mxu0
    %v2228 = vsel %vm144, %v2220, 0.0
    %2229 = vadd.xlane.f32.xlu0 %v2228
    %v2230 = vpop.xlane.xlu0 %2229
    %v2231 = vsel %vm144, %v2225, 0.0
    %2232 = vadd.xlane.f32.xlu0 %v2231
    %v2233 = vpop.xlane.xlu0 %2232
    %v2234 = vmul.f32 %v2230, %v151
    %v2235 = vmul.f32 %v2233, %v151
    %v2236 = vsub.f32 %v2220, %v2234
    %v2237 = vsub.f32 %v2225, %v2235
    %v2238 = vmul.f32 %v2236, %v2236
    %v2239 = vmul.f32 %v2237, %v2237
    %v2240 = vsel %vm144, %v2238, 0.0
    %2241 = vadd.xlane.f32.xlu0 %v2240
    %v2242 = vpop.xlane.xlu0 %2241
    %v2243 = vsel %vm144, %v2239, 0.0
    %2244 = vadd.xlane.f32.xlu0 %v2243
    %v2245 = vpop.xlane.xlu0 %2244
    %v2246 = vmul.f32 %v2242, %v151
    %v2247 = vmul.f32 %v2245, %v151
    %v2248 = vadd.f32 %v2246, 1e-05
    %v2249 = vadd.f32 %v2247, 1e-05
    %v2250 = vrsqrt.pop %v2248
    %v2251 = vrsqrt.pop %v2249
    %v2252 = vmul.f32 %v2236, %v2250
    %v2253 = vmul.f32 %v2237, %v2251
    %v2254 = vlaneseq
    %v2255 = vshrl.u32 %v2254, 7
    %v2256 = vsub.s32 7, %v2255
    %v2257 = vrot.slane %v42, %v2256
    %v2258 = vmul.f32 %v2252, %v2257
    %v2259 = vmul.f32 %v2253, %v2257
    %v2260 = vlaneseq
    %v2261 = vshrl.u32 %v2260, 7
    %v2262 = vsub.s32 0, %v2261
    %v2263 = vrot.slane %v43, %v2262
    %v2264 = vadd.f32 %v2258, %v2263
    %v2265 = vadd.f32 %v2259, %v2263
    %v2266 = vmul.f32 %v2264, 0.5
    %v2267 = vmul.f32 %v2265, 0.5
    %v2268 = vmul.f32 %v2264, 0.70710677
    %v2269 = vmul.f32 %v2265, 0.70710677
    %vm2270 = vcmp.ge.f32.partialorder %v2268, 0.0
    %vm2271 = vcmp.ge.f32.partialorder %v2269, 0.0
    %v2272 = vsel %vm2270, 1.0, -1.0
    %v2273 = vsel %vm2271, 1.0, -1.0
    %v2274 = vand.u32 2147483647, %v2268
    %v2275 = vand.u32 2147483647, %v2269
    %v2276 = vmul.f32 %v2274, 0.3275911
    %v2277 = vmul.f32 %v2275, 0.3275911
    %v2278 = vadd.f32 %v2276, 1.0
    %v2279 = vadd.f32 %v2277, 1.0
    %v2280 = vrcp.pop %v2278
    %v2281 = vmul.f32 1.0, %v2280
    %v2282 = vrcp.pop %v2279
    %v2283 = vmul.f32 1.0, %v2282
    %v2284 = vmul.f32 %v2281, 1.0614054
    %v2285 = vmul.f32 %v2283, 1.0614054
    %v2286 = vadd.f32 %v2284, -1.4531521
    %v2287 = vadd.f32 %v2285, -1.4531521
    %v2288 = vmul.f32 %v2286, %v2281
    %v2289 = vmul.f32 %v2287, %v2283
    %v2290 = vadd.f32 %v2288, 1.4214138
    %v2291 = vadd.f32 %v2289, 1.4214138
    %v2292 = vmul.f32 %v2290, %v2281
    %v2293 = vmul.f32 %v2291, %v2283
    %v2294 = vadd.f32 %v2292, -0.28449672
    %v2295 = vadd.f32 %v2293, -0.28449672
    %v2296 = vmul.f32 %v2294, %v2281
    %v2297 = vmul.f32 %v2295, %v2283
    %v2298 = vadd.f32 %v2296, 0.2548296
    %v2299 = vadd.f32 %v2297, 0.2548296
    %v2300 = vmul.f32 %v2298, %v2281
    %v2301 = vmul.f32 %v2299, %v2283
    %v2302 = vsub.f32 0.0, %v2274
    %v2303 = vsub.f32 0.0, %v2275
    %v2304 = vmul.f32 %v2302, %v2274
    %v2305 = vmul.f32 %v2303, %v2275
    %v2306 = vmul.f32 %v2304, 1.442695
    %v2307 = vpow.pop %v2306
    %v2308 = vmul.f32 %v2305, 1.442695
    %v2309 = vpow.pop %v2308
    %v2310 = vmul.f32 %v2300, %v2307
    %v2311 = vmul.f32 %v2301, %v2309
    %v2312 = vsub.f32 1.0, %v2310
    %v2313 = vsub.f32 1.0, %v2311
    %v2314 = vmul.f32 %v2272, %v2312
    %v2315 = vmul.f32 %v2273, %v2313
    %v2316 = vadd.f32 %v2314, 1.0
    %v2317 = vadd.f32 %v2315, 1.0
    %v2318 = vmul.f32 %v2266, %v2316
    %v2319 = vmul.f32 %v2267, %v2317
    %v2320 = vlaneseq
    %v2321 = vshrl.u32 %v2320, 7
    %v2322 = vsub.s32 1, %v2321
    %v2323 = vrot.slane %v43, %v2322
    %v2324 = vmul.f32 %v2318, %v2323
    %v2325 = vmul.f32 %v2319, %v2323
    %v2326 = vsel %vm144, %v2324, 0.0
    %2327 = vadd.xlane.f32.xlu0 %v2326
    %v2328 = vpop.xlane.xlu0 %2327
    %v2329 = vsel %vm144, %v2325, 0.0
    %2330 = vadd.xlane.f32.xlu0 %v2329
    %v2331 = vpop.xlane.xlu0 %2330
    %v2333 = vrot.slane %v43, 2
    %s2334 = vtos %v2333
    %v2335 = vstv %s2334
    %v2337 = vadd.f32 %v2328, %v2335
    %v2338 = vadd.f32 %v2331, %v2335
    %v2341 = vlaneseq
    %v2342 = vand.u32 %v2341, 127
    %v2343 = vlaneseq
    %v2344 = vshrl.u32 %v2343, 7
    %v2345 = vsub.s32 %v2342, %v2344
    %v2346 = vrot.slane %v2337, %v2345
    %v2347 = vlaneseq
    %v2348 = vshrl.u32 %v2347, 7
    %v2349 = vsub.s32 %v2342, %v2348
    %v2350 = vrot.slane %v2338, %v2349
    %vm2351 = vcmask 1041409
    %v2352 = vsel %vm2351, %v2350, %v2346
    %vm2354 = vcmask 58368
    %2355 = vst.msk [vmem:[#allocation2] sm:$0x3] %vm2354, %v2352
    // Predicated region
    $region26: #{cross_attn_decoder.1} parent=1 // pred_check
      _
    $region27: #{cross_attn_decoder.1} parent=1 // pred_check_branch
      %2357 = sbr.rel (0) target = $region29
    $region28: #{cross_attn_decoder.1} parent=1 // pred_region
      %s2359 = ssub.s32 32, 32
      %2360 = vsyncadd [#allocation3], %s2359
      %s2362 = sshll.u32 [#allocation2], 4
      %s2363 = int_to_ptr.vmem [resolvable:$true] %s2362
      %2365 = dma.vmem_to_hbm [thread:$0]  %s2363, 32, %s6, [#allocation3]
    $region29: #{cross_attn_decoder.1} parent=1 // pred_fallthru
      _
    // Predicated region
    $region30: #{cross_attn_decoder.1} parent=1 // pred_check
      _
    $region31: #{cross_attn_decoder.1} parent=1 // pred_check_branch
      %2367 = sbr.rel (0) target = $region33
    $region32: #{cross_attn_decoder.1} parent=1 // pred_region
      %2368 = dma.done [#allocation3], 32
    $region33: #{cross_attn_decoder.1} parent=1 // pred_fallthru
      _
    %2369 = vsyncpa [#allocation3], 1

</llo_original>
